<compile_context>
chip_gen: v6e
topology: v6e:2x2x1
jax: 0.10.0
libtpu: 0.0.40
codegen_flags: <defaults>
</compile_context>

<pallas_src>
import functools
import math

import jax
import jax.numpy as jnp
from jax import lax
from jax.experimental import pallas as pl
from jax.experimental.pallas import tpu as pltpu


# ---------------------------------------------------------------------------
# helpers
# ---------------------------------------------------------------------------

def _itemsize(dtype):
    return jnp.dtype(dtype).itemsize


def _physical_vmem_bytes():
    try:
        return int(pltpu.get_tpu_info().vmem_capacity_bytes)
    except Exception:
        return 64 << 20        # conservative default (v7x per-core VMEM)


def _pick_cout_block(c_out, c_in, hw, compute_dtype, out_itemsize, fixed_bytes):
    """Largest multiple-of-8 divisor of c_out whose per-step footprint fits."""
    budget = (_physical_vmem_bytes() * 11) // 20      # ~55% of physical VMEM
    divisors = [d for d in (256, 128, 64, 32, 16, 8) if c_out % d == 0]
    if not divisors:
        # Awkward channel counts: use the full output dim as one block.
        return c_out
    for d in divisors:                                # largest first
        per_cb = 2 * d * (9 * c_in * _itemsize(compute_dtype)
                          + hw * out_itemsize + hw * 4)
        if fixed_bytes + per_cb <= budget:
            return d
    return divisors[-1]


def _dx_masks(height, width, dtype):
    """(2, H*W) lane masks killing the row wrap of the dx=-1 / dx=+1 taps."""
    xx = jnp.tile(jnp.arange(width), height)
    left = xx >= 1                  # source column x-1 valid
    right = xx <= width - 2         # source column x+1 valid
    return jnp.stack([left, right], axis=0).astype(dtype)


def _group_matrices(c, groups, hw, dtype=jnp.float32):
    """(G, C) scaled group-sum and (C, G) broadcast-back matrices for GroupNorm."""
    assert c % groups == 0, (c, groups)
    gsz = c // groups
    gid = jnp.arange(c) // gsz
    onehot = (jnp.arange(groups)[:, None] == gid[None, :])       # (G, C)
    gsum = onehot.astype(dtype) / float(gsz * hw)                 # rowsums -> group mean
    gbcast = onehot.T.astype(dtype)                               # group -> channels
    return gsum, gbcast


# ---------------------------------------------------------------------------
# fused GroupNorm + SiLU + Conv3x3 (+ skip) kernel
# ---------------------------------------------------------------------------

def _fused_gn_swish_conv3x3_kernel(*refs, c_in, hw, width, apply_gn, res_mode,
                                   eps, compute_dtype):
    it = iter(refs)
    x_ref = next(it)                                   # (1, c_in, hw)
    if apply_gn:
        gsum_ref = next(it)                            # (G, c_in)
        gbc_ref = next(it)                             # (c_in, G)
        gamma_ref = next(it)                           # (c_in, 1)
        beta_ref = next(it)                            # (c_in, 1)
    w_ref = next(it)                                   # (9, cb, c_in) compute_dtype
    b_ref = next(it)                                   # (cb, 1) f32
    mask_ref = next(it)                                # (2, hw) compute_dtype
    if res_mode == "add":
        res_ref = next(it)                             # (1, cb, hw)
    elif res_mode == "conv1x1":
        xs_ref = next(it)                              # (1, c_skip, hw)
        sw_ref = next(it)                              # (cb, c_skip) compute_dtype
        sb_ref = next(it)                              # (cb, 1) f32
    o_ref = next(it)                                   # (1, cb, hw)
    hpad_ref = next(it)                                # (c_in, hw + 2*(width+1))
    cbuf_ref = next(it)                                # (9, c_in, hw)

    pad = width + 1

    # ---- per-(batch, input) work, cached across all c_out blocks -----------
    @pl.when(pl.program_id(1) == 0)
    def _fill_input_cache():
        x = x_ref[0].astype(jnp.float32)               # (c_in, hw)
        if apply_gn:
            # Group statistics from per-channel row sums via (G,C)/(C,G) mats.
            # NOTE: E[x^2]-mean^2 form (clamped) -- fine at these tolerances.
            s1 = jnp.sum(x, axis=1, keepdims=True)     # (c_in, 1)
            s2 = jnp.sum(x * x, axis=1, keepdims=True)
            mean = jnp.dot(gbc_ref[...],
                           jnp.dot(gsum_ref[...], s1,
                                   preferred_element_type=jnp.float32),
                           preferred_element_type=jnp.float32)
            ex2 = jnp.dot(gbc_ref[...],
                          jnp.dot(gsum_ref[...], s2,
                                  preferred_element_type=jnp.float32),
                          preferred_element_type=jnp.float32)
            var = jnp.maximum(ex2 - mean * mean, 0.0)
            inv = lax.rsqrt(var + eps)
            h = (x - mean) * (inv * gamma_ref[...]) + beta_ref[...]
            h = h * (1.0 / (1.0 + jnp.exp(-h)))        # SiLU (swish)
        else:
            h = x
        hc = h.astype(compute_dtype)                   # cast once for the MXU

        # Zero-bordered flat copy: each tap shift is a static-offset slice.
        zeros = jnp.zeros((c_in, pad), compute_dtype)
        hpad_ref[:, 0:pad] = zeros
        hpad_ref[:, pad:pad + hw] = hc
        hpad_ref[:, pad + hw:pad + hw + pad] = zeros

        m_left = mask_ref[0:1, :]
        m_right = mask_ref[1:2, :]
        for t in range(9):
            dy, dx = t // 3 - 1, t % 3 - 1
            start = pad + dy * width + dx              # static per tap
            shifted = hpad_ref[:, start:start + hw]    # (c_in, hw)
            if dx == -1:
                shifted = shifted * m_left             # kill row wrap (once)
            elif dx == 1:
                shifted = shifted * m_right
            cbuf_ref[t] = shifted

    # ---- per c_out-block work: 9 MXU matmuls + bias (+ fused skip) ---------
    cb = o_ref.shape[1]
    acc = jnp.zeros((cb, hw), jnp.float32)
    for t in range(9):
        acc = acc + jnp.dot(w_ref[t], cbuf_ref[t],
                            preferred_element_type=jnp.float32)
    acc = acc + b_ref[...]

    if res_mode == "add":
        acc = acc + res_ref[0].astype(jnp.float32)
    elif res_mode == "conv1x1":
        acc = acc + jnp.dot(sw_ref[...], xs_ref[0].astype(compute_dtype),
                            preferred_element_type=jnp.float32)
        acc = acc + sb_ref[...]

    o_ref[0] = acc.astype(o_ref.dtype)


def _gn_swish_conv3x3(x_flat, gamma, beta, weight, bias, *,
                      height, width, num_groups, apply_gn=True,
                      residual=None, skip=None, eps=1e-5,
                      compute_dtype=jnp.bfloat16, out_dtype=jnp.float32):
    """Fused [GroupNorm+SiLU ->] Conv3x3(pad=1) [-> +residual | +Conv1x1(skip)]."""
    b, c_in, hw = x_flat.shape
    c_out = weight.shape[0]
    assert weight.shape == (c_out, c_in, 3, 3), weight.shape
    assert hw == height * width
    # Lane-dense outputs: unmasked full-lane stores.
    # TODO(synk): pad hw up to a multiple of 128 instead of asserting.
    assert hw % 128 == 0, "H*W must be a multiple of 128"
    assert residual is None or skip is None

    cdt = jnp.dtype(compute_dtype)
    x_isz = _itemsize(x_flat.dtype)
    pad = width + 1

    # Per-tap (9, C_out, C_in) weights, pre-cast once to the MXU compute dtype.
    w_taps = jnp.transpose(weight, (2, 3, 0, 1)).reshape(9, c_out, c_in)
    w_taps = w_taps.astype(cdt)
    b_col = bias.astype(jnp.float32).reshape(c_out, 1)
    masks = _dx_masks(height, width, cdt)              # (2, hw)

    scratch_bytes = (c_in * (hw + 2 * pad) + 9 * c_in * hw) * _itemsize(cdt)
    fixed_bytes = 2 * c_in * hw * x_isz + scratch_bytes
    cb = _pick_cout_block(c_out, c_in, hw, cdt, _itemsize(out_dtype), fixed_bytes)
    grid = (b, c_out // cb)

    inputs = [x_flat]
    in_specs = [pl.BlockSpec((1, c_in, hw), lambda bi, ji: (bi, 0, 0))]
    est = fixed_bytes
    if apply_gn:
        gsum, gbcast = _group_matrices(c_in, num_groups, hw)
        inputs += [gsum, gbcast,
                   gamma.astype(jnp.float32).reshape(c_in, 1),
                   beta.astype(jnp.float32).reshape(c_in, 1)]
        in_specs += [
            pl.BlockSpec((num_groups, c_in), lambda bi, ji: (0, 0)),
            pl.BlockSpec((c_in, num_groups), lambda bi, ji: (0, 0)),
            pl.BlockSpec((c_in, 1), lambda bi, ji: (0, 0)),
            pl.BlockSpec((c_in, 1), lambda bi, ji: (0, 0)),
        ]
        est += 2 * (2 * num_groups * c_in + 2 * c_in) * 4

    inputs += [w_taps, b_col, masks]
    in_specs += [
        pl.BlockSpec((9, cb, c_in), lambda bi, ji: (0, ji, 0)),
        pl.BlockSpec((cb, 1), lambda bi, ji: (ji, 0)),
        pl.BlockSpec((2, hw), lambda bi, ji: (0, 0)),
    ]
    est += 2 * (9 * cb * c_in * _itemsize(cdt) + cb * 4 + 2 * hw * _itemsize(cdt))

    if residual is not None:
        res_mode = "add"
        assert residual.shape == (b, c_out, hw), residual.shape
        inputs.append(residual)
        in_specs.append(pl.BlockSpec((1, cb, hw), lambda bi, ji: (bi, ji, 0)))
        est += 2 * cb * hw * _itemsize(residual.dtype)
    elif skip is not None:
        res_mode = "conv1x1"
        skip_x, skip_w, skip_b = skip
        c_skip = skip_x.shape[1]
        inputs += [skip_x,
                   skip_w.reshape(c_out, c_skip).astype(cdt),
                   skip_b.astype(jnp.float32).reshape(c_out, 1)]
        in_specs += [
            pl.BlockSpec((1, c_skip, hw), lambda bi, ji: (bi, 0, 0)),
            pl.BlockSpec((cb, c_skip), lambda bi, ji: (ji, 0)),
            pl.BlockSpec((cb, 1), lambda bi, ji: (ji, 0)),
        ]
        est += 2 * (c_skip * hw * _itemsize(skip_x.dtype)
                    + cb * c_skip * _itemsize(cdt) + cb * 4)
    else:
        res_mode = "none"

    est += 2 * cb * hw * _itemsize(out_dtype)          # output block (x2 buffers)

    vmem_limit = min(max(int(est * 1.25) + (2 << 20), 32 << 20),
                     (_physical_vmem_bytes() * 3) // 4)

    kernel = functools.partial(
        _fused_gn_swish_conv3x3_kernel, c_in=c_in, hw=hw, width=width,
        apply_gn=apply_gn, res_mode=res_mode, eps=eps, compute_dtype=cdt)

    return pl.pallas_call(
        kernel,
        out_shape=jax.ShapeDtypeStruct((b, c_out, hw), out_dtype),
        grid=grid,
        in_specs=in_specs,
        out_specs=pl.BlockSpec((1, cb, hw), lambda bi, ji: (bi, ji, 0)),
        scratch_shapes=[
            pltpu.VMEM((c_in, hw + 2 * pad), cdt),     # zero-bordered activations
            pltpu.VMEM((9, c_in, hw), cdt),            # per-tap shifted+masked cache
        ],
        compiler_params=pltpu.CompilerParams(
            # batch -> megacore split; c_out blocks iterate sequentially so the
            # j==0 input cache in the persistent scratch stays valid per core.
            dimension_semantics=("parallel", "arbitrary"),
            vmem_limit_bytes=vmem_limit),
    )(*inputs)


# ---------------------------------------------------------------------------
# full block forward
# ---------------------------------------------------------------------------

def resblock_no_time_embedding_forward(x, params, *, num_groups=32,
                                       dropout=0.0, up=False, down=False,
                                       dims=2, training=False,
                                       compute_dtype=jnp.bfloat16):
    """Forward pass of karlo ResBlockNoTimeEmbedding on NCHW inputs (eval mode)."""
    del dropout                        # eval-mode nn.Dropout is the identity
    if dims != 2:
        raise NotImplementedError("only dims=2 is implemented")  # TODO(synk): dims=1/3
    if up or down:
        raise NotImplementedError("up/down resampling")  # TODO(synk): resample path
    if training:
        raise NotImplementedError("training dropout")  # TODO(synk): pltpu.prng_* dropout

    b, c, height, width = x.shape
    hw = height * width
    c_out = params["conv1_w"].shape[0]

    x_flat = x.reshape(b, c, hw)       # no host-side upcast; kernels upcast on load
    inter_dtype = (jnp.float32 if jnp.dtype(compute_dtype) == jnp.float32
                   else jnp.bfloat16)  # bf16 inter-stage tensors in bf16 mode

    conv = functools.partial(_gn_swish_conv3x3, height=height, width=width,
                             num_groups=num_groups, compute_dtype=compute_dtype)

    # in_layers: GroupNorm + SiLU + Conv3x3 (fused)
    h1 = conv(x_flat, params["gn1_gamma"], params["gn1_beta"],
              params["conv1_w"], params["conv1_b"], out_dtype=inter_dtype)

    # skip connection
    residual = None
    skip = None
    if "skip_w" not in params:
        assert c_out == c, "skip weights required when out_channels != channels"
        residual = x_flat                               # identity skip (exact add)
    elif params["skip_w"].shape[-1] == 1:               # default: 1x1 conv skip
        skip = (x_flat, params["skip_w"], params["skip_b"])   # fused into stage 2
    else:                                               # use_conv=True: 3x3 skip
        residual = conv(x_flat, None, None, params["skip_w"], params["skip_b"],
                        apply_gn=False, out_dtype=inter_dtype)

    # out_layers: GroupNorm + SiLU + Dropout(id) + Conv3x3, fused with the
    # skip (identity / 1x1 conv / precomputed 3x3) so the final add costs no
    # extra HBM pass.
    out_flat = conv(h1, params["gn2_gamma"], params["gn2_beta"],
                    params["conv2_w"], params["conv2_b"],
                    residual=residual, skip=skip, out_dtype=jnp.float32)

    return out_flat.reshape(b, c_out, height, width).astype(x.dtype)


# ----------------------------- pure-JAX reference -----------------------------

def _ref_groupnorm_swish(x, gamma, beta, groups, eps=1e-5):
    b, c, h, w = x.shape
    xg = x.reshape(b, groups, (c // groups) * h * w)
    mean = jnp.mean(xg, axis=2, keepdims=True)
    var = jnp.var(xg, axis=2, keepdims=True)
    xn = ((xg - mean) / jnp.sqrt(var + eps)).reshape(b, c, h, w)
    y = xn * gamma[None, :, None, None] + beta[None, :, None, None]
    return y * jax.nn.sigmoid(y)


def _ref_conv(x, w, bvec):
    return lax.conv_general_dilated(
        x, w, window_strides=(1, 1), padding="SAME",
        dimension_numbers=("NCHW", "OIHW", "NCHW")) + bvec[None, :, None, None]


def _ref_resblock(x, p, groups):
    h = _ref_groupnorm_swish(x, p["gn1_gamma"], p["gn1_beta"], groups)
    h = _ref_conv(h, p["conv1_w"], p["conv1_b"])
    h = _ref_groupnorm_swish(h, p["gn2_gamma"], p["gn2_beta"], groups)
    h = _ref_conv(h, p["conv2_w"], p["conv2_b"])
    skip = _ref_conv(x, p["skip_w"], p["skip_b"]) if "skip_w" in p else x
    return skip + h


def _make_params(key, c, c_out, skip_kernel=None):
    ks = jax.random.split(key, 10)

    def conv_init(kw, kb, co, ci, k):
        bound = 1.0 / math.sqrt(ci * k * k)
        w = jax.random.uniform(kw, (co, ci, k, k), jnp.float32, -bound, bound)
        bvec = jax.random.uniform(kb, (co,), jnp.float32, -bound, bound)
        return w, bvec

    p = {
        "gn1_gamma": 1.0 + 0.1 * jax.random.normal(ks[0], (c,), jnp.float32),
        "gn1_beta": 0.1 * jax.random.normal(ks[1], (c,), jnp.float32),
        "gn2_gamma": 1.0 + 0.1 * jax.random.normal(ks[4], (c_out,), jnp.float32),
        "gn2_beta": 0.1 * jax.random.normal(ks[5], (c_out,), jnp.float32),
    }
    p["conv1_w"], p["conv1_b"] = conv_init(ks[2], ks[3], c_out, c, 3)
    # NOTE: conv2 is zero_module() at init in the original module; random
    # weights are used here so the numerical check is non-trivial.
    p["conv2_w"], p["conv2_b"] = conv_init(ks[6], ks[7], c_out, c_out, 3)
    if skip_kernel is not None:
        p["skip_w"], p["skip_b"] = conv_init(ks[8], ks[9], c_out, c, skip_kernel)
    return p


if __name__ == "__main__":
    key = jax.random.PRNGKey(0)
    k_x, k1, k2, k3 = jax.random.split(key, 4)

    B, C, H, W = 2, 8, 16, 16
    GROUPS = 4   # the real module uses 32 groups; 4 keeps the demo channels small
    x = jax.random.normal(k_x, (B, C, H, W), jnp.float32)

    def run_and_check(p, groups, compute_dtype, tol, tag):
        out = jax.block_until_ready(
            resblock_no_time_embedding_forward(
                x, p, num_groups=groups, compute_dtype=compute_dtype))
        ref = _ref_resblock(x, p, groups)
        assert out.shape == ref.shape, (tag, out.shape, ref.shape)
        err = float(jnp.max(jnp.abs(out - ref)))
        assert jnp.allclose(out, ref, atol=tol, rtol=tol), (tag, err)

    # Case 1: out_channels == channels -> identity skip (f32 compute, tight check).
    p1 = _make_params(k1, C, C)
    run_and_check(p1, GROUPS, jnp.float32, 2e-3, "identity-skip/f32")

    # Case 2: out_channels != channels -> 1x1 conv skip fused into the last stage.
    C_OUT = 16
    p2 = _make_params(k2, C, C_OUT, skip_kernel=1)
    run_and_check(p2, GROUPS, jnp.float32, 2e-3, "conv1x1-skip/f32")
    run_and_check(p2, GROUPS, jnp.bfloat16, 4e-2, "conv1x1-skip/bf16")

    # Case 3: out_channels != channels, use_conv=True -> 3x3 conv skip.
    p3 = _make_params(k3, C, C_OUT, skip_kernel=3)
    run_and_check(p3, GROUPS, jnp.bfloat16, 4e-2, "conv3x3-skip/bf16")

    print("KERNEL_OK")
</pallas_src>

<mosaic_0001>
module attributes {stable_mosaic.version = 11 : i64} {
  func.func @_fused_gn_swish_conv3x3_kernel(%arg0: i32, %arg1: i32, %arg2: memref<1x8x256xf32, #tpu.memory_space<vmem>>, %arg3: memref<4x8xf32, #tpu.memory_space<vmem>>, %arg4: memref<8x4xf32, #tpu.memory_space<vmem>>, %arg5: memref<8x1xf32, #tpu.memory_space<vmem>>, %arg6: memref<8x1xf32, #tpu.memory_space<vmem>>, %arg7: memref<9x8x8xf32, #tpu.memory_space<vmem>>, %arg8: memref<8x1xf32, #tpu.memory_space<vmem>>, %arg9: memref<2x256xf32, #tpu.memory_space<vmem>>, %arg10: memref<1x8x256xf32, #tpu.memory_space<vmem>>, %arg11: memref<8x290xf32, #tpu.memory_space<vmem>>, %arg12: memref<9x8x256xf32, #tpu.memory_space<vmem>>) attributes {dimension_semantics = [#tpu.dimension_semantics<parallel>, #tpu.dimension_semantics<arbitrary>], iteration_bounds = array<i64: 2, 1>, scalar_prefetch = 0 : i64, scratch_operands = 2 : i64, tpu.core_type = #tpu.core_type<tc>, window_params = [{transform_indices = @transform_0, window_bounds = array<i64: 1, 8, 256>}, {pipeline_mode = #tpu.pipeline_mode<synchronous>, transform_indices = @transform_1, window_bounds = array<i64: 4, 8>}, {pipeline_mode = #tpu.pipeline_mode<synchronous>, transform_indices = @transform_2, window_bounds = array<i64: 8, 4>}, {pipeline_mode = #tpu.pipeline_mode<synchronous>, transform_indices = @transform_3, window_bounds = array<i64: 8, 1>}, {pipeline_mode = #tpu.pipeline_mode<synchronous>, transform_indices = @transform_4, window_bounds = array<i64: 8, 1>}, {transform_indices = @transform_5, window_bounds = array<i64: 9, 8, 8>}, {transform_indices = @transform_6, window_bounds = array<i64: 8, 1>}, {pipeline_mode = #tpu.pipeline_mode<synchronous>, transform_indices = @transform_7, window_bounds = array<i64: 2, 256>}, {transform_indices = @transform_8, window_bounds = array<i64: 1, 8, 256>}]} {
    %c0_i32 = arith.constant 0 : i32
    %0 = arith.cmpi eq, %arg1, %c0_i32 : i32
    %1 = arith.extui %0 : i1 to i32
    %c0_i32_0 = arith.constant 0 : i32
    %2 = arith.cmpi ne, %1, %c0_i32_0 : i32
    scf.if %2 {
      %c0_60 = arith.constant 0 : index
      %c0_61 = arith.constant 0 : index
      %c0_62 = arith.constant 0 : index
      %64 = vector.load %arg2[%c0_60, %c0_61, %c0_62] : memref<1x8x256xf32, #tpu.memory_space<vmem>>, vector<1x8x256xf32>
      %65 = vector.shape_cast %64 : vector<1x8x256xf32> to vector<8x256xf32>
      %cst_63 = arith.constant dense<0.000000e+00> : vector<8xf32>
      %66 = vector.multi_reduction <add>, %65, %cst_63 [1] : vector<8x256xf32> to vector<8xf32>
      %67 = vector.shape_cast %66 : vector<8xf32> to vector<8x1xf32>
      %68 = arith.mulf %65, %65 : vector<8x256xf32>
      %cst_64 = arith.constant dense<0.000000e+00> : vector<8xf32>
      %69 = vector.multi_reduction <add>, %68, %cst_64 [1] : vector<8x256xf32> to vector<8xf32>
      %70 = vector.shape_cast %69 : vector<8xf32> to vector<8x1xf32>
      %c0_65 = arith.constant 0 : index
      %c0_66 = arith.constant 0 : index
      %71 = vector.load %arg4[%c0_65, %c0_66] : memref<8x4xf32, #tpu.memory_space<vmem>>, vector<8x4xf32>
      %c0_67 = arith.constant 0 : index
      %c0_68 = arith.constant 0 : index
      %72 = vector.load %arg3[%c0_67, %c0_68] : memref<4x8xf32, #tpu.memory_space<vmem>>, vector<4x8xf32>
      %cst_69 = arith.constant dense<0.000000e+00> : vector<4x1xf32>
      %73 = tpu.matmul %72, %67, %cst_69 {dimension_numbers = #tpu.dot_dimension_numbers<[1], [0], [0], [1], [0, 0, 1, 1], [], []>} : vector<4x8xf32>, vector<8x1xf32>, vector<4x1xf32> -> vector<4x1xf32>
      %cst_70 = arith.constant dense<0.000000e+00> : vector<8x1xf32>
      %74 = tpu.matmul %71, %73, %cst_70 {dimension_numbers = #tpu.dot_dimension_numbers<[1], [0], [0], [1], [0, 0, 1, 1], [], []>} : vector<8x4xf32>, vector<4x1xf32>, vector<8x1xf32> -> vector<8x1xf32>
      %c0_71 = arith.constant 0 : index
      %c0_72 = arith.constant 0 : index
      %75 = vector.load %arg4[%c0_71, %c0_72] : memref<8x4xf32, #tpu.memory_space<vmem>>, vector<8x4xf32>
      %c0_73 = arith.constant 0 : index
      %c0_74 = arith.constant 0 : index
      %76 = vector.load %arg3[%c0_73, %c0_74] : memref<4x8xf32, #tpu.memory_space<vmem>>, vector<4x8xf32>
      %cst_75 = arith.constant dense<0.000000e+00> : vector<4x1xf32>
      %77 = tpu.matmul %76, %70, %cst_75 {dimension_numbers = #tpu.dot_dimension_numbers<[1], [0], [0], [1], [0, 0, 1, 1], [], []>} : vector<4x8xf32>, vector<8x1xf32>, vector<4x1xf32> -> vector<4x1xf32>
      %cst_76 = arith.constant dense<0.000000e+00> : vector<8x1xf32>
      %78 = tpu.matmul %75, %77, %cst_76 {dimension_numbers = #tpu.dot_dimension_numbers<[1], [0], [0], [1], [0, 0, 1, 1], [], []>} : vector<8x4xf32>, vector<4x1xf32>, vector<8x1xf32> -> vector<8x1xf32>
      %79 = arith.mulf %74, %74 : vector<8x1xf32>
      %80 = arith.subf %78, %79 : vector<8x1xf32>
      %cst_77 = arith.constant 0.000000e+00 : f32
      %81 = vector.broadcast %cst_77 : f32 to vector<8x1xf32>
      %82 = arith.maximumf %80, %81 : vector<8x1xf32>
      %cst_78 = arith.constant 9.99999974E-6 : f32
      %83 = vector.broadcast %cst_78 : f32 to vector<8x1xf32>
      %84 = arith.addf %82, %83 : vector<8x1xf32>
      %85 = math.rsqrt %84 : vector<8x1xf32>
      %86 = vector.broadcast %74 : vector<8x1xf32> to vector<8x256xf32>
      %87 = arith.subf %65, %86 : vector<8x256xf32>
      %c0_79 = arith.constant 0 : index
      %c0_80 = arith.constant 0 : index
      %88 = vector.load %arg5[%c0_79, %c0_80] : memref<8x1xf32, #tpu.memory_space<vmem>>, vector<8x1xf32>
      %89 = arith.mulf %85, %88 : vector<8x1xf32>
      %90 = vector.broadcast %89 : vector<8x1xf32> to vector<8x256xf32>
      %91 = arith.mulf %87, %90 : vector<8x256xf32>
      %c0_81 = arith.constant 0 : index
      %c0_82 = arith.constant 0 : index
      %92 = vector.load %arg6[%c0_81, %c0_82] : memref<8x1xf32, #tpu.memory_space<vmem>>, vector<8x1xf32>
      %93 = vector.broadcast %92 : vector<8x1xf32> to vector<8x256xf32>
      %94 = arith.addf %91, %93 : vector<8x256xf32>
      %cst_83 = arith.constant 0.000000e+00 : f32
      %95 = vector.broadcast %cst_83 : f32 to vector<8x256xf32>
      %96 = arith.subf %95, %94 : vector<8x256xf32>
      %97 = math.exp %96 : vector<8x256xf32>
      %cst_84 = arith.constant 1.000000e+00 : f32
      %98 = vector.broadcast %cst_84 : f32 to vector<8x256xf32>
      %99 = arith.addf %98, %97 : vector<8x256xf32>
      %cst_85 = arith.constant 1.000000e+00 : f32
      %100 = vector.broadcast %cst_85 : f32 to vector<8x256xf32>
      %101 = arith.divf %100, %99 : vector<8x256xf32>
      %102 = arith.mulf %94, %101 : vector<8x256xf32>
      %cst_86 = arith.constant 0.000000e+00 : f32
      %103 = vector.broadcast %cst_86 : f32 to vector<8x17xf32>
      %c0_87 = arith.constant 0 : index
      %c0_88 = arith.constant 0 : index
      %104 = vector.load %arg11[%c0_87, %c0_88] : memref<8x290xf32, #tpu.memory_space<vmem>>, vector<8x17xf32>
      tpu.vector_store %arg11[%c0_87, %c0_88], %103 {strides = array<i32>} : memref<8x290xf32, #tpu.memory_space<vmem>>, vector<8x17xf32>,
      %c0_89 = arith.constant 0 : index
      %c17 = arith.constant 17 : index
      %105 = vector.load %arg11[%c0_89, %c17] : memref<8x290xf32, #tpu.memory_space<vmem>>, vector<8x256xf32>
      tpu.vector_store %arg11[%c0_89, %c17], %102 {strides = array<i32>} : memref<8x290xf32, #tpu.memory_space<vmem>>, vector<8x256xf32>,
      %c0_90 = arith.constant 0 : index
      %c273 = arith.constant 273 : index
      %106 = vector.load %arg11[%c0_90, %c273] : memref<8x290xf32, #tpu.memory_space<vmem>>, vector<8x17xf32>
      tpu.vector_store %arg11[%c0_90, %c273], %103 {strides = array<i32>} : memref<8x290xf32, #tpu.memory_space<vmem>>, vector<8x17xf32>,
      %c0_91 = arith.constant 0 : index
      %c0_92 = arith.constant 0 : index
      %107 = vector.load %arg9[%c0_91, %c0_92] : memref<2x256xf32, #tpu.memory_space<vmem>>, vector<1x256xf32>
      %c1_93 = arith.constant 1 : index
      %c0_94 = arith.constant 0 : index
      %108 = vector.load %arg9[%c1_93, %c0_94] : memref<2x256xf32, #tpu.memory_space<vmem>>, vector<1x256xf32>
      %c0_95 = arith.constant 0 : index
      %c0_96 = arith.constant 0 : index
      %109 = vector.load %arg11[%c0_95, %c0_96] : memref<8x290xf32, #tpu.memory_space<vmem>>, vector<8x256xf32>
      %110 = vector.broadcast %107 : vector<1x256xf32> to vector<8x256xf32>
      %111 = arith.mulf %109, %110 : vector<8x256xf32>
      %c0_97 = arith.constant 0 : index
      %c0_98 = arith.constant 0 : index
      %c0_99 = arith.constant 0 : index
      %112 = vector.load %arg12[%c0_97, %c0_98, %c0_99] : memref<9x8x256xf32, #tpu.memory_space<vmem>>, vector<1x8x256xf32>
      %113 = vector.shape_cast %112 : vector<1x8x256xf32> to vector<8x256xf32>
      %114 = vector.shape_cast %111 : vector<8x256xf32> to vector<1x8x256xf32>
      tpu.vector_store %arg12[%c0_97, %c0_98, %c0_99], %114 {strides = array<i32>} : memref<9x8x256xf32, #tpu.memory_space<vmem>>, vector<1x8x256xf32>,
      %c0_100 = arith.constant 0 : index
      %c1_101 = arith.constant 1 : index
      %115 = vector.load %arg11[%c0_100, %c1_101] : memref<8x290xf32, #tpu.memory_space<vmem>>, vector<8x256xf32>
      %c1_102 = arith.constant 1 : index
      %c0_103 = arith.constant 0 : index
      %c0_104 = arith.constant 0 : index
      %116 = vector.load %arg12[%c1_102, %c0_103, %c0_104] : memref<9x8x256xf32, #tpu.memory_space<vmem>>, vector<1x8x256xf32>
      %117 = vector.shape_cast %116 : vector<1x8x256xf32> to vector<8x256xf32>
      %118 = vector.shape_cast %115 : vector<8x256xf32> to vector<1x8x256xf32>
      tpu.vector_store %arg12[%c1_102, %c0_103, %c0_104], %118 {strides = array<i32>} : memref<9x8x256xf32, #tpu.memory_space<vmem>>, vector<1x8x256xf32>,
      %c0_105 = arith.constant 0 : index
      %c2_106 = arith.constant 2 : index
      %119 = vector.load %arg11[%c0_105, %c2_106] : memref<8x290xf32, #tpu.memory_space<vmem>>, vector<8x256xf32>
      %120 = vector.broadcast %108 : vector<1x256xf32> to vector<8x256xf32>
      %121 = arith.mulf %119, %120 : vector<8x256xf32>
      %c2_107 = arith.constant 2 : index
      %c0_108 = arith.constant 0 : index
      %c0_109 = arith.constant 0 : index
      %122 = vector.load %arg12[%c2_107, %c0_108, %c0_109] : memref<9x8x256xf32, #tpu.memory_space<vmem>>, vector<1x8x256xf32>
      %123 = vector.shape_cast %122 : vector<1x8x256xf32> to vector<8x256xf32>
      %124 = vector.shape_cast %121 : vector<8x256xf32> to vector<1x8x256xf32>
      tpu.vector_store %arg12[%c2_107, %c0_108, %c0_109], %124 {strides = array<i32>} : memref<9x8x256xf32, #tpu.memory_space<vmem>>, vector<1x8x256xf32>,
      %c0_110 = arith.constant 0 : index
      %c16 = arith.constant 16 : index
      %125 = vector.load %arg11[%c0_110, %c16] : memref<8x290xf32, #tpu.memory_space<vmem>>, vector<8x256xf32>
      %126 = vector.broadcast %107 : vector<1x256xf32> to vector<8x256xf32>
      %127 = arith.mulf %125, %126 : vector<8x256xf32>
      %c3_111 = arith.constant 3 : index
      %c0_112 = arith.constant 0 : index
      %c0_113 = arith.constant 0 : index
      %128 = vector.load %arg12[%c3_111, %c0_112, %c0_113] : memref<9x8x256xf32, #tpu.memory_space<vmem>>, vector<1x8x256xf32>
      %129 = vector.shape_cast %128 : vector<1x8x256xf32> to vector<8x256xf32>
      %130 = vector.shape_cast %127 : vector<8x256xf32> to vector<1x8x256xf32>
      tpu.vector_store %arg12[%c3_111, %c0_112, %c0_113], %130 {strides = array<i32>} : memref<9x8x256xf32, #tpu.memory_space<vmem>>, vector<1x8x256xf32>,
      %c0_114 = arith.constant 0 : index
      %c17_115 = arith.constant 17 : index
      %131 = vector.load %arg11[%c0_114, %c17_115] : memref<8x290xf32, #tpu.memory_space<vmem>>, vector<8x256xf32>
      %c4_116 = arith.constant 4 : index
      %c0_117 = arith.constant 0 : index
      %c0_118 = arith.constant 0 : index
      %132 = vector.load %arg12[%c4_116, %c0_117, %c0_118] : memref<9x8x256xf32, #tpu.memory_space<vmem>>, vector<1x8x256xf32>
      %133 = vector.shape_cast %132 : vector<1x8x256xf32> to vector<8x256xf32>
      %134 = vector.shape_cast %131 : vector<8x256xf32> to vector<1x8x256xf32>
      tpu.vector_store %arg12[%c4_116, %c0_117, %c0_118], %134 {strides = array<i32>} : memref<9x8x256xf32, #tpu.memory_space<vmem>>, vector<1x8x256xf32>,
      %c0_119 = arith.constant 0 : index
      %c18 = arith.constant 18 : index
      %135 = vector.load %arg11[%c0_119, %c18] : memref<8x290xf32, #tpu.memory_space<vmem>>, vector<8x256xf32>
      %136 = vector.broadcast %108 : vector<1x256xf32> to vector<8x256xf32>
      %137 = arith.mulf %135, %136 : vector<8x256xf32>
      %c5_120 = arith.constant 5 : index
      %c0_121 = arith.constant 0 : index
      %c0_122 = arith.constant 0 : index
      %138 = vector.load %arg12[%c5_120, %c0_121, %c0_122] : memref<9x8x256xf32, #tpu.memory_space<vmem>>, vector<1x8x256xf32>
      %139 = vector.shape_cast %138 : vector<1x8x256xf32> to vector<8x256xf32>
      %140 = vector.shape_cast %137 : vector<8x256xf32> to vector<1x8x256xf32>
      tpu.vector_store %arg12[%c5_120, %c0_121, %c0_122], %140 {strides = array<i32>} : memref<9x8x256xf32, #tpu.memory_space<vmem>>, vector<1x8x256xf32>,
      %c0_123 = arith.constant 0 : index
      %c32 = arith.constant 32 : index
      %141 = vector.load %arg11[%c0_123, %c32] : memref<8x290xf32, #tpu.memory_space<vmem>>, vector<8x256xf32>
      %142 = vector.broadcast %107 : vector<1x256xf32> to vector<8x256xf32>
      %143 = arith.mulf %141, %142 : vector<8x256xf32>
      %c6_124 = arith.constant 6 : index
      %c0_125 = arith.constant 0 : index
      %c0_126 = arith.constant 0 : index
      %144 = vector.load %arg12[%c6_124, %c0_125, %c0_126] : memref<9x8x256xf32, #tpu.memory_space<vmem>>, vector<1x8x256xf32>
      %145 = vector.shape_cast %144 : vector<1x8x256xf32> to vector<8x256xf32>
      %146 = vector.shape_cast %143 : vector<8x256xf32> to vector<1x8x256xf32>
      tpu.vector_store %arg12[%c6_124, %c0_125, %c0_126], %146 {strides = array<i32>} : memref<9x8x256xf32, #tpu.memory_space<vmem>>, vector<1x8x256xf32>,
      %c0_127 = arith.constant 0 : index
      %c33 = arith.constant 33 : index
      %147 = vector.load %arg11[%c0_127, %c33] : memref<8x290xf32, #tpu.memory_space<vmem>>, vector<8x256xf32>
      %c7_128 = arith.constant 7 : index
      %c0_129 = arith.constant 0 : index
      %c0_130 = arith.constant 0 : index
      %148 = vector.load %arg12[%c7_128, %c0_129, %c0_130] : memref<9x8x256xf32, #tpu.memory_space<vmem>>, vector<1x8x256xf32>
      %149 = vector.shape_cast %148 : vector<1x8x256xf32> to vector<8x256xf32>
      %150 = vector.shape_cast %147 : vector<8x256xf32> to vector<1x8x256xf32>
      tpu.vector_store %arg12[%c7_128, %c0_129, %c0_130], %150 {strides = array<i32>} : memref<9x8x256xf32, #tpu.memory_space<vmem>>, vector<1x8x256xf32>,
      %c0_131 = arith.constant 0 : index
      %c34 = arith.constant 34 : index
      %151 = vector.load %arg11[%c0_131, %c34] : memref<8x290xf32, #tpu.memory_space<vmem>>, vector<8x256xf32>
      %152 = vector.broadcast %108 : vector<1x256xf32> to vector<8x256xf32>
      %153 = arith.mulf %151, %152 : vector<8x256xf32>
      %c8_132 = arith.constant 8 : index
      %c0_133 = arith.constant 0 : index
      %c0_134 = arith.constant 0 : index
      %154 = vector.load %arg12[%c8_132, %c0_133, %c0_134] : memref<9x8x256xf32, #tpu.memory_space<vmem>>, vector<1x8x256xf32>
      %155 = vector.shape_cast %154 : vector<1x8x256xf32> to vector<8x256xf32>
      %156 = vector.shape_cast %153 : vector<8x256xf32> to vector<1x8x256xf32>
      tpu.vector_store %arg12[%c8_132, %c0_133, %c0_134], %156 {strides = array<i32>} : memref<9x8x256xf32, #tpu.memory_space<vmem>>, vector<1x8x256xf32>,
    } else {
    }
    %cst = arith.constant 0.000000e+00 : f32
    %3 = vector.broadcast %cst : f32 to vector<8x256xf32>
    %c0 = arith.constant 0 : index
    %c0_1 = arith.constant 0 : index
    %c0_2 = arith.constant 0 : index
    %4 = vector.load %arg7[%c0, %c0_1, %c0_2] : memref<9x8x8xf32, #tpu.memory_space<vmem>>, vector<1x8x8xf32>
    %5 = vector.shape_cast %4 : vector<1x8x8xf32> to vector<8x8xf32>
    %c0_3 = arith.constant 0 : index
    %c0_4 = arith.constant 0 : index
    %c0_5 = arith.constant 0 : index
    %6 = vector.load %arg12[%c0_3, %c0_4, %c0_5] : memref<9x8x256xf32, #tpu.memory_space<vmem>>, vector<1x8x256xf32>
    %7 = vector.shape_cast %6 : vector<1x8x256xf32> to vector<8x256xf32>
    %cst_6 = arith.constant dense<0.000000e+00> : vector<8x256xf32>
    %8 = tpu.matmul %5, %7, %cst_6 {dimension_numbers = #tpu.dot_dimension_numbers<[1], [0], [0], [1], [0, 0, 1, 1], [], []>} : vector<8x8xf32>, vector<8x256xf32>, vector<8x256xf32> -> vector<8x256xf32>
    %9 = arith.addf %3, %8 : vector<8x256xf32>
    %c1 = arith.constant 1 : index
    %c0_7 = arith.constant 0 : index
    %c0_8 = arith.constant 0 : index
    %10 = vector.load %arg7[%c1, %c0_7, %c0_8] : memref<9x8x8xf32, #tpu.memory_space<vmem>>, vector<1x8x8xf32>
    %11 = vector.shape_cast %10 : vector<1x8x8xf32> to vector<8x8xf32>
    %c1_9 = arith.constant 1 : index
    %c0_10 = arith.constant 0 : index
    %c0_11 = arith.constant 0 : index
    %12 = vector.load %arg12[%c1_9, %c0_10, %c0_11] : memref<9x8x256xf32, #tpu.memory_space<vmem>>, vector<1x8x256xf32>
    %13 = vector.shape_cast %12 : vector<1x8x256xf32> to vector<8x256xf32>
    %cst_12 = arith.constant dense<0.000000e+00> : vector<8x256xf32>
    %14 = tpu.matmul %11, %13, %cst_12 {dimension_numbers = #tpu.dot_dimension_numbers<[1], [0], [0], [1], [0, 0, 1, 1], [], []>} : vector<8x8xf32>, vector<8x256xf32>, vector<8x256xf32> -> vector<8x256xf32>
    %15 = arith.addf %9, %14 : vector<8x256xf32>
    %c2 = arith.constant 2 : index
    %c0_13 = arith.constant 0 : index
    %c0_14 = arith.constant 0 : index
    %16 = vector.load %arg7[%c2, %c0_13, %c0_14] : memref<9x8x8xf32, #tpu.memory_space<vmem>>, vector<1x8x8xf32>
    %17 = vector.shape_cast %16 : vector<1x8x8xf32> to vector<8x8xf32>
    %c2_15 = arith.constant 2 : index
    %c0_16 = arith.constant 0 : index
    %c0_17 = arith.constant 0 : index
    %18 = vector.load %arg12[%c2_15, %c0_16, %c0_17] : memref<9x8x256xf32, #tpu.memory_space<vmem>>, vector<1x8x256xf32>
    %19 = vector.shape_cast %18 : vector<1x8x256xf32> to vector<8x256xf32>
    %cst_18 = arith.constant dense<0.000000e+00> : vector<8x256xf32>
    %20 = tpu.matmul %17, %19, %cst_18 {dimension_numbers = #tpu.dot_dimension_numbers<[1], [0], [0], [1], [0, 0, 1, 1], [], []>} : vector<8x8xf32>, vector<8x256xf32>, vector<8x256xf32> -> vector<8x256xf32>
    %21 = arith.addf %15, %20 : vector<8x256xf32>
    %c3 = arith.constant 3 : index
    %c0_19 = arith.constant 0 : index
    %c0_20 = arith.constant 0 : index
    %22 = vector.load %arg7[%c3, %c0_19, %c0_20] : memref<9x8x8xf32, #tpu.memory_space<vmem>>, vector<1x8x8xf32>
    %23 = vector.shape_cast %22 : vector<1x8x8xf32> to vector<8x8xf32>
    %c3_21 = arith.constant 3 : index
    %c0_22 = arith.constant 0 : index
    %c0_23 = arith.constant 0 : index
    %24 = vector.load %arg12[%c3_21, %c0_22, %c0_23] : memref<9x8x256xf32, #tpu.memory_space<vmem>>, vector<1x8x256xf32>
    %25 = vector.shape_cast %24 : vector<1x8x256xf32> to vector<8x256xf32>
    %cst_24 = arith.constant dense<0.000000e+00> : vector<8x256xf32>
    %26 = tpu.matmul %23, %25, %cst_24 {dimension_numbers = #tpu.dot_dimension_numbers<[1], [0], [0], [1], [0, 0, 1, 1], [], []>} : vector<8x8xf32>, vector<8x256xf32>, vector<8x256xf32> -> vector<8x256xf32>
    %27 = arith.addf %21, %26 : vector<8x256xf32>
    %c4 = arith.constant 4 : index
    %c0_25 = arith.constant 0 : index
    %c0_26 = arith.constant 0 : index
    %28 = vector.load %arg7[%c4, %c0_25, %c0_26] : memref<9x8x8xf32, #tpu.memory_space<vmem>>, vector<1x8x8xf32>
    %29 = vector.shape_cast %28 : vector<1x8x8xf32> to vector<8x8xf32>
    %c4_27 = arith.constant 4 : index
    %c0_28 = arith.constant 0 : index
    %c0_29 = arith.constant 0 : index
    %30 = vector.load %arg12[%c4_27, %c0_28, %c0_29] : memref<9x8x256xf32, #tpu.memory_space<vmem>>, vector<1x8x256xf32>
    %31 = vector.shape_cast %30 : vector<1x8x256xf32> to vector<8x256xf32>
    %cst_30 = arith.constant dense<0.000000e+00> : vector<8x256xf32>
    %32 = tpu.matmul %29, %31, %cst_30 {dimension_numbers = #tpu.dot_dimension_numbers<[1], [0], [0], [1], [0, 0, 1, 1], [], []>} : vector<8x8xf32>, vector<8x256xf32>, vector<8x256xf32> -> vector<8x256xf32>
    %33 = arith.addf %27, %32 : vector<8x256xf32>
    %c5 = arith.constant 5 : index
    %c0_31 = arith.constant 0 : index
    %c0_32 = arith.constant 0 : index
    %34 = vector.load %arg7[%c5, %c0_31, %c0_32] : memref<9x8x8xf32, #tpu.memory_space<vmem>>, vector<1x8x8xf32>
    %35 = vector.shape_cast %34 : vector<1x8x8xf32> to vector<8x8xf32>
    %c5_33 = arith.constant 5 : index
    %c0_34 = arith.constant 0 : index
    %c0_35 = arith.constant 0 : index
    %36 = vector.load %arg12[%c5_33, %c0_34, %c0_35] : memref<9x8x256xf32, #tpu.memory_space<vmem>>, vector<1x8x256xf32>
    %37 = vector.shape_cast %36 : vector<1x8x256xf32> to vector<8x256xf32>
    %cst_36 = arith.constant dense<0.000000e+00> : vector<8x256xf32>
    %38 = tpu.matmul %35, %37, %cst_36 {dimension_numbers = #tpu.dot_dimension_numbers<[1], [0], [0], [1], [0, 0, 1, 1], [], []>} : vector<8x8xf32>, vector<8x256xf32>, vector<8x256xf32> -> vector<8x256xf32>
    %39 = arith.addf %33, %38 : vector<8x256xf32>
    %c6 = arith.constant 6 : index
    %c0_37 = arith.constant 0 : index
    %c0_38 = arith.constant 0 : index
    %40 = vector.load %arg7[%c6, %c0_37, %c0_38] : memref<9x8x8xf32, #tpu.memory_space<vmem>>, vector<1x8x8xf32>
    %41 = vector.shape_cast %40 : vector<1x8x8xf32> to vector<8x8xf32>
    %c6_39 = arith.constant 6 : index
    %c0_40 = arith.constant 0 : index
    %c0_41 = arith.constant 0 : index
    %42 = vector.load %arg12[%c6_39, %c0_40, %c0_41] : memref<9x8x256xf32, #tpu.memory_space<vmem>>, vector<1x8x256xf32>
    %43 = vector.shape_cast %42 : vector<1x8x256xf32> to vector<8x256xf32>
    %cst_42 = arith.constant dense<0.000000e+00> : vector<8x256xf32>
    %44 = tpu.matmul %41, %43, %cst_42 {dimension_numbers = #tpu.dot_dimension_numbers<[1], [0], [0], [1], [0, 0, 1, 1], [], []>} : vector<8x8xf32>, vector<8x256xf32>, vector<8x256xf32> -> vector<8x256xf32>
    %45 = arith.addf %39, %44 : vector<8x256xf32>
    %c7 = arith.constant 7 : index
    %c0_43 = arith.constant 0 : index
    %c0_44 = arith.constant 0 : index
    %46 = vector.load %arg7[%c7, %c0_43, %c0_44] : memref<9x8x8xf32, #tpu.memory_space<vmem>>, vector<1x8x8xf32>
    %47 = vector.shape_cast %46 : vector<1x8x8xf32> to vector<8x8xf32>
    %c7_45 = arith.constant 7 : index
    %c0_46 = arith.constant 0 : index
    %c0_47 = arith.constant 0 : index
    %48 = vector.load %arg12[%c7_45, %c0_46, %c0_47] : memref<9x8x256xf32, #tpu.memory_space<vmem>>, vector<1x8x256xf32>
    %49 = vector.shape_cast %48 : vector<1x8x256xf32> to vector<8x256xf32>
    %cst_48 = arith.constant dense<0.000000e+00> : vector<8x256xf32>
    %50 = tpu.matmul %47, %49, %cst_48 {dimension_numbers = #tpu.dot_dimension_numbers<[1], [0], [0], [1], [0, 0, 1, 1], [], []>} : vector<8x8xf32>, vector<8x256xf32>, vector<8x256xf32> -> vector<8x256xf32>
    %51 = arith.addf %45, %50 : vector<8x256xf32>
    %c8 = arith.constant 8 : index
    %c0_49 = arith.constant 0 : index
    %c0_50 = arith.constant 0 : index
    %52 = vector.load %arg7[%c8, %c0_49, %c0_50] : memref<9x8x8xf32, #tpu.memory_space<vmem>>, vector<1x8x8xf32>
    %53 = vector.shape_cast %52 : vector<1x8x8xf32> to vector<8x8xf32>
    %c8_51 = arith.constant 8 : index
    %c0_52 = arith.constant 0 : index
    %c0_53 = arith.constant 0 : index
    %54 = vector.load %arg12[%c8_51, %c0_52, %c0_53] : memref<9x8x256xf32, #tpu.memory_space<vmem>>, vector<1x8x256xf32>
    %55 = vector.shape_cast %54 : vector<1x8x256xf32> to vector<8x256xf32>
    %cst_54 = arith.constant dense<0.000000e+00> : vector<8x256xf32>
    %56 = tpu.matmul %53, %55, %cst_54 {dimension_numbers = #tpu.dot_dimension_numbers<[1], [0], [0], [1], [0, 0, 1, 1], [], []>} : vector<8x8xf32>, vector<8x256xf32>, vector<8x256xf32> -> vector<8x256xf32>
    %57 = arith.addf %51, %56 : vector<8x256xf32>
    %c0_55 = arith.constant 0 : index
    %c0_56 = arith.constant 0 : index
    %58 = vector.load %arg8[%c0_55, %c0_56] : memref<8x1xf32, #tpu.memory_space<vmem>>, vector<8x1xf32>
    %59 = vector.broadcast %58 : vector<8x1xf32> to vector<8x256xf32>
    %60 = arith.addf %57, %59 : vector<8x256xf32>
    %c0_57 = arith.constant 0 : index
    %c0_58 = arith.constant 0 : index
    %c0_59 = arith.constant 0 : index
    %61 = vector.load %arg10[%c0_57, %c0_58, %c0_59] : memref<1x8x256xf32, #tpu.memory_space<vmem>>, vector<1x8x256xf32>
    %62 = vector.shape_cast %61 : vector<1x8x256xf32> to vector<8x256xf32>
    %63 = vector.shape_cast %60 : vector<8x256xf32> to vector<1x8x256xf32>
    tpu.vector_store %arg10[%c0_57, %c0_58, %c0_59], %63 {strides = array<i32>} : memref<1x8x256xf32, #tpu.memory_space<vmem>>, vector<1x8x256xf32>,
    return
  }
  func.func @transform_0(%arg0: i32, %arg1: i32) -> (i32, i32, i32) {
    %c0_i32 = arith.constant 0 : i32
    %c0_i32_0 = arith.constant 0 : i32
    %c0_i32_1 = arith.constant 0 : i32
    return %arg0, %c0_i32, %c0_i32_0 : i32, i32, i32
  }
  func.func @transform_1(%arg0: i32, %arg1: i32) -> (i32, i32) {
    %c0_i32 = arith.constant 0 : i32
    %c0_i32_0 = arith.constant 0 : i32
    %c0_i32_1 = arith.constant 0 : i32
    return %c0_i32, %c0_i32_0 : i32, i32
  }
  func.func @transform_2(%arg0: i32, %arg1: i32) -> (i32, i32) {
    %c0_i32 = arith.constant 0 : i32
    %c0_i32_0 = arith.constant 0 : i32
    %c0_i32_1 = arith.constant 0 : i32
    return %c0_i32, %c0_i32_0 : i32, i32
  }
  func.func @transform_3(%arg0: i32, %arg1: i32) -> (i32, i32) {
    %c0_i32 = arith.constant 0 : i32
    %c0_i32_0 = arith.constant 0 : i32
    %c0_i32_1 = arith.constant 0 : i32
    return %c0_i32, %c0_i32_0 : i32, i32
  }
  func.func @transform_4(%arg0: i32, %arg1: i32) -> (i32, i32) {
    %c0_i32 = arith.constant 0 : i32
    %c0_i32_0 = arith.constant 0 : i32
    %c0_i32_1 = arith.constant 0 : i32
    return %c0_i32, %c0_i32_0 : i32, i32
  }
  func.func @transform_5(%arg0: i32, %arg1: i32) -> (i32, i32, i32) {
    %c0_i32 = arith.constant 0 : i32
    %c0_i32_0 = arith.constant 0 : i32
    %c0_i32_1 = arith.constant 0 : i32
    return %c0_i32, %arg1, %c0_i32_0 : i32, i32, i32
  }
  func.func @transform_6(%arg0: i32, %arg1: i32) -> (i32, i32) {
    %c0_i32 = arith.constant 0 : i32
    %c0_i32_0 = arith.constant 0 : i32
    return %arg1, %c0_i32 : i32, i32
  }
  func.func @transform_7(%arg0: i32, %arg1: i32) -> (i32, i32) {
    %c0_i32 = arith.constant 0 : i32
    %c0_i32_0 = arith.constant 0 : i32
    %c0_i32_1 = arith.constant 0 : i32
    return %c0_i32, %c0_i32_0 : i32, i32
  }
  func.func @transform_8(%arg0: i32, %arg1: i32) -> (i32, i32, i32) {
    %c0_i32 = arith.constant 0 : i32
    %c0_i32_0 = arith.constant 0 : i32
    return %arg0, %arg1, %c0_i32 : i32, i32, i32
  }
}

</mosaic_0001>

<llo_original>
// kernel: tpu_custom_call.1
$region0: #{tpu_custom_call.1}
  #allocation0 [shape = 'u32[]', space=smem, size = 0x4, offset = 0x4, fixed_abs, tag = 'smem constant byte address 0x4 - core index']
  #allocation1 [shape = 'u32[144,128]{1,0:T(1,128)}', space=vmem, size = 0x12000, scoped, tag = 'internal scratch']
  #allocation2 [shape = 'f32[8,290]{1,0:T(8,128)}', space=vmem, size = 0x3000, scoped, tag = 'scratch operand']
  #allocation3 [shape = 'f32[9,8,256]{2,1,0:T(8,128)}', space=vmem, size = 0x12000, scoped, tag = 'scratch operand']
  %s0 = inlined_call_operand.vmem [shape: f32[2,8,256], index: 0, kind: input, shape index: {}]
  %s1 = inlined_call_operand.vmem [shape: f32[4,8], index: 1, kind: input, shape index: {}]
  %s2 = inlined_call_operand.vmem [shape: f32[8,4], index: 2, kind: input, shape index: {}]
  %s3 = inlined_call_operand.vmem [shape: f32[8,1], index: 3, kind: input, shape index: {}]
  %s4 = inlined_call_operand.vmem [shape: f32[8,1], index: 4, kind: input, shape index: {}]
  %s5 = inlined_call_operand.vmem [shape: f32[9,8,8], index: 5, kind: input, shape index: {}]
  %s6 = inlined_call_operand.vmem [shape: f32[8,1], index: 6, kind: input, shape index: {}]
  %s7 = inlined_call_operand.vmem [shape: f32[2,256], index: 7, kind: input, shape index: {}]
  %s8 = inlined_call_operand.hbm [shape: f32[2,8,256], index: 8, kind: output, shape index: {}]
  %s9 = sld [smem:[#allocation0]]
  $region69: #{tpu_custom_call.1} parent=0
    _
  %s11 = ssub.s32 1, %s9
  %s12 = scalar_select 0, %s11, %s9
  $region1: #{tpu_custom_call.1} parent=0
    #allocation4 [shape = 'u8[16384]{0}', space=vmem, size = 0x4000, scoped, tag = 'output window, operand 0']
    #allocation5 [shape = 's32[2]{0}', space=sflag, size = 0x8, scoped, tag = 'scoped memory for tpu_custom_call.1']
    %13 = vsyncpa [#allocation5], 0
    %s14 = scalar_lea.sflag [#allocation5], 1
    %15 = vsyncpa %s14, 0
    loop: start=0, step=1, limit=4
    $region2: #{tpu_custom_call.1} parent=1 // loop_pre_header
      _
    $region3: #{tpu_custom_call.1} parent=1 // loop_header
      %s17 = sphi 0, %s21
      %p18 = scmp.ge.s32.totalorder %s17, 4
      %s24 = sphi 0, %s36
      %s25 = sphi 0, %s32
      %s26 = sphi 0, %s24
      %s27 = sphi 0, %s25
      %s28 = sphi 0, %s26
      %s29 = sphi 0, %s27
      %s39 = sphi 0, %s41
      %s42 = sphi 0, %s39
      %s43 = sphi 0, %s42
      %s59 = sphi 0, %s43
      %s63 = sphi 0, %s63
      %s65 = sphi 0, %s63
      %s66 = sphi 0, %s65
      %s80 = sphi 0, %s66
      %s84 = sphi 0, %s84
      %s86 = sphi 0, %s84
      %s87 = sphi 0, %s86
      %s101 = sphi 0, %s87
      %s105 = sphi 0, %s105
      %s107 = sphi 0, %s105
      %s108 = sphi 0, %s107
      %s122 = sphi 0, %s108
      %s126 = sphi 0, %s126
      %s128 = sphi 0, %s126
      %s129 = sphi 0, %s128
      %s143 = sphi 0, %s129
      %s149 = sphi 0, %s151
      %s152 = sphi 0, %s149
      %s153 = sphi 0, %s152
      %s169 = sphi 0, %s153
      %s175 = sphi 0, %s177
      %s178 = sphi 0, %s175
      %s179 = sphi 0, %s178
      %s195 = sphi 0, %s179
      %s199 = sphi 0, %s199
      %s201 = sphi 0, %s199
      %s202 = sphi 0, %s201
      %s216 = sphi 0, %s202
      %s224 = sphi 0, %s226
      %s227 = sphi 0, %s224
      %s228 = sphi 0, %s227
      %s244 = sphi 0, %s228
    $region4: #{tpu_custom_call.1} parent=1 // loop_header_branch
      %20 = sbr.rel (%p18) target = $region8
    $region5: #{tpu_custom_call.1} parent=1 // loop_body
      %s22 = ssub.s32 %s17, 1
      %s23 = ssub.s32 %s17, 2
      %s30 = sadd.s32 1, %s25
      %p31 = scmp.ge.s32.totalorder %s30, 1
      %s32 = scalar_select %p31, 0, %s30
      %s33 = sadd.s32 1, %s24
      %s34 = scalar_select %p31, %s33, %s24
      %p35 = scmp.ge.s32.totalorder %s34, 2
      %s36 = scalar_select %p35, 0, %s34
      %s37 = ssub.s32 %s24, %s36
      %p38 = scmp.eq.s32.totalorder %s37, 0
      %s40 = sadd.s32 %s39, 1
      %s41 = scalar_select %p38, %s39, %s40
      %p44 = pneg %p38
      %p45 = scmp.eq.s32.totalorder %s17, 1
      %p46 = por %p44, %p45
      %p47 = scmp.ne.s32.totalorder %s39, %s42
      %p48 = scmp.eq.s32.totalorder %s17, 0
      %p49 = por %p47, %p48
      %p50 = scmp.ne.s32.totalorder %s39, %s42
      %p51 = scmp.eq.s32.totalorder %s22, 1
      %p52 = por %p50, %p51
      %p53 = scmp.ne.s32.totalorder %s42, %s43
      %p54 = scmp.eq.s32.totalorder %s22, 0
      %p55 = por %p53, %p54
      %p56 = scmp.ne.s32.totalorder %s42, %s43
      %p57 = scmp.eq.s32.totalorder %s23, 1
      %p58 = por %p56, %p57
      %p60 = scmp.ne.s32.totalorder %s43, %s59
      %p61 = scmp.eq.s32.totalorder %s23, 0
      %p62 = por %p60, %p61
      %s64 = sadd.s32 %s63, 1
      %p67 = scmp.eq.s32.totalorder %s17, 1
      %p68 = scmp.ne.s32.totalorder %s63, %s65
      %p69 = scmp.eq.s32.totalorder %s17, 0
      %p70 = por %p68, %p69
      %p71 = scmp.ne.s32.totalorder %s63, %s65
      %p72 = scmp.eq.s32.totalorder %s22, 1
      %p73 = por %p71, %p72
      %p74 = scmp.ne.s32.totalorder %s65, %s66
      %p75 = scmp.eq.s32.totalorder %s22, 0
      %p76 = por %p74, %p75
      %p77 = scmp.ne.s32.totalorder %s65, %s66
      %p78 = scmp.eq.s32.totalorder %s23, 1
      %p79 = por %p77, %p78
      %p81 = scmp.ne.s32.totalorder %s66, %s80
      %p82 = scmp.eq.s32.totalorder %s23, 0
      %p83 = por %p81, %p82
      %s85 = sadd.s32 %s84, 1
      %p88 = scmp.eq.s32.totalorder %s17, 1
      %p89 = scmp.ne.s32.totalorder %s84, %s86
      %p90 = scmp.eq.s32.totalorder %s17, 0
      %p91 = por %p89, %p90
      %p92 = scmp.ne.s32.totalorder %s84, %s86
      %p93 = scmp.eq.s32.totalorder %s22, 1
      %p94 = por %p92, %p93
      %p95 = scmp.ne.s32.totalorder %s86, %s87
      %p96 = scmp.eq.s32.totalorder %s22, 0
      %p97 = por %p95, %p96
      %p98 = scmp.ne.s32.totalorder %s86, %s87
      %p99 = scmp.eq.s32.totalorder %s23, 1
      %p100 = por %p98, %p99
      %p102 = scmp.ne.s32.totalorder %s87, %s101
      %p103 = scmp.eq.s32.totalorder %s23, 0
      %p104 = por %p102, %p103
      %s106 = sadd.s32 %s105, 1
      %p109 = scmp.eq.s32.totalorder %s17, 1
      %p110 = scmp.ne.s32.totalorder %s105, %s107
      %p111 = scmp.eq.s32.totalorder %s17, 0
      %p112 = por %p110, %p111
      %p113 = scmp.ne.s32.totalorder %s105, %s107
      %p114 = scmp.eq.s32.totalorder %s22, 1
      %p115 = por %p113, %p114
      %p116 = scmp.ne.s32.totalorder %s107, %s108
      %p117 = scmp.eq.s32.totalorder %s22, 0
      %p118 = por %p116, %p117
      %p119 = scmp.ne.s32.totalorder %s107, %s108
      %p120 = scmp.eq.s32.totalorder %s23, 1
      %p121 = por %p119, %p120
      %p123 = scmp.ne.s32.totalorder %s108, %s122
      %p124 = scmp.eq.s32.totalorder %s23, 0
      %p125 = por %p123, %p124
      %s127 = sadd.s32 %s126, 1
      %p130 = scmp.eq.s32.totalorder %s17, 1
      %p131 = scmp.ne.s32.totalorder %s126, %s128
      %p132 = scmp.eq.s32.totalorder %s17, 0
      %p133 = por %p131, %p132
      %p134 = scmp.ne.s32.totalorder %s126, %s128
      %p135 = scmp.eq.s32.totalorder %s22, 1
      %p136 = por %p134, %p135
      %p137 = scmp.ne.s32.totalorder %s128, %s129
      %p138 = scmp.eq.s32.totalorder %s22, 0
      %p139 = por %p137, %p138
      %p140 = scmp.ne.s32.totalorder %s128, %s129
      %p141 = scmp.eq.s32.totalorder %s23, 1
      %p142 = por %p140, %p141
      %p144 = scmp.ne.s32.totalorder %s129, %s143
      %p145 = scmp.eq.s32.totalorder %s23, 0
      %p146 = por %p144, %p145
      %s147 = ssub.s32 %s25, %s32
      %p148 = scmp.eq.s32.totalorder %s147, 0
      %s150 = sadd.s32 %s149, 1
      %s151 = scalar_select %p148, %s149, %s150
      %p154 = pneg %p148
      %p155 = scmp.eq.s32.totalorder %s17, 1
      %p156 = por %p154, %p155
      %p157 = scmp.ne.s32.totalorder %s149, %s152
      %p158 = scmp.eq.s32.totalorder %s17, 0
      %p159 = por %p157, %p158
      %p160 = scmp.ne.s32.totalorder %s149, %s152
      %p161 = scmp.eq.s32.totalorder %s22, 1
      %p162 = por %p160, %p161
      %p163 = scmp.ne.s32.totalorder %s152, %s153
      %p164 = scmp.eq.s32.totalorder %s22, 0
      %p165 = por %p163, %p164
      %p166 = scmp.ne.s32.totalorder %s152, %s153
      %p167 = scmp.eq.s32.totalorder %s23, 1
      %p168 = por %p166, %p167
      %p170 = scmp.ne.s32.totalorder %s153, %s169
      %p171 = scmp.eq.s32.totalorder %s23, 0
      %p172 = por %p170, %p171
      %s173 = ssub.s32 %s25, %s32
      %p174 = scmp.eq.s32.totalorder %s173, 0
      %s176 = sadd.s32 %s175, 1
      %s177 = scalar_select %p174, %s175, %s176
      %p180 = pneg %p174
      %p181 = scmp.eq.s32.totalorder %s17, 1
      %p182 = por %p180, %p181
      %p183 = scmp.ne.s32.totalorder %s175, %s178
      %p184 = scmp.eq.s32.totalorder %s17, 0
      %p185 = por %p183, %p184
      %p186 = scmp.ne.s32.totalorder %s175, %s178
      %p187 = scmp.eq.s32.totalorder %s22, 1
      %p188 = por %p186, %p187
      %p189 = scmp.ne.s32.totalorder %s178, %s179
      %p190 = scmp.eq.s32.totalorder %s22, 0
      %p191 = por %p189, %p190
      %p192 = scmp.ne.s32.totalorder %s178, %s179
      %p193 = scmp.eq.s32.totalorder %s23, 1
      %p194 = por %p192, %p193
      %p196 = scmp.ne.s32.totalorder %s179, %s195
      %p197 = scmp.eq.s32.totalorder %s23, 0
      %p198 = por %p196, %p197
      %s200 = sadd.s32 %s199, 1
      %p203 = scmp.eq.s32.totalorder %s17, 1
      %p204 = scmp.ne.s32.totalorder %s199, %s201
      %p205 = scmp.eq.s32.totalorder %s17, 0
      %p206 = por %p204, %p205
      %p207 = scmp.ne.s32.totalorder %s199, %s201
      %p208 = scmp.eq.s32.totalorder %s22, 1
      %p209 = por %p207, %p208
      %p210 = scmp.ne.s32.totalorder %s201, %s202
      %p211 = scmp.eq.s32.totalorder %s22, 0
      %p212 = por %p210, %p211
      %p213 = scmp.ne.s32.totalorder %s201, %s202
      %p214 = scmp.eq.s32.totalorder %s23, 1
      %p215 = por %p213, %p214
      %p217 = scmp.ne.s32.totalorder %s202, %s216
      %p218 = scmp.eq.s32.totalorder %s23, 0
      %p219 = por %p217, %p218
      %s220 = ssub.s32 %s24, %s36
      %s221 = ssub.s32 %s25, %s32
      %s222 = sor.u32 %s220, %s221
      %p223 = scmp.eq.s32.totalorder %s222, 0
      %s225 = sadd.s32 %s224, 1
      %s226 = scalar_select %p223, %s224, %s225
      %p229 = pneg %p223
      %p230 = scmp.eq.s32.totalorder %s17, 1
      %p231 = por %p229, %p230
      %p232 = scmp.ne.s32.totalorder %s224, %s227
      %p233 = scmp.eq.s32.totalorder %s17, 0
      %p234 = por %p232, %p233
      %p235 = scmp.ne.s32.totalorder %s224, %s227
      %p236 = scmp.eq.s32.totalorder %s22, 1
      %p237 = por %p235, %p236
      %p238 = scmp.ne.s32.totalorder %s227, %s228
      %p239 = scmp.eq.s32.totalorder %s22, 0
      %p240 = por %p238, %p239
      %p241 = scmp.ne.s32.totalorder %s227, %s228
      %p242 = scmp.eq.s32.totalorder %s23, 1
      %p243 = por %p241, %p242
      %p245 = scmp.ne.s32.totalorder %s228, %s244
      %p246 = scmp.eq.s32.totalorder %s23, 0
      %p247 = por %p245, %p246
      %p248 = scmp.le.s32.totalorder 1, %s17
      %p249 = scmp.lt.s32.totalorder %s17, 3
      %p250 = pnand %p248, %p249
      %p251 = pneg %p250
      // Predicated region
      $region9: #{tpu_custom_call.1} parent=5 // pred_check
        _
      $region10: #{tpu_custom_call.1} parent=5 // pred_check_branch
        %253 = sbr.rel (%p250) target = $region12
      $region11: #{tpu_custom_call.1} parent=5 // pred_region
        %s254 = ssub.s32 %s17, 1
        // Predicated region
        $region13: #{tpu_custom_call.1} parent=11 // pred_check
          %p255 = pneg %p76
        $region14: #{tpu_custom_call.1} parent=11 // pred_check_branch
          %257 = sbr.rel (%p255) target = $region16
        $region15: #{tpu_custom_call.1} parent=11 // pred_region
          _
        $region16: #{tpu_custom_call.1} parent=11 // pred_fallthru
          _
        // Predicated region
        $region17: #{tpu_custom_call.1} parent=11 // pred_check
          %p258 = pneg %p97
        $region18: #{tpu_custom_call.1} parent=11 // pred_check_branch
          %260 = sbr.rel (%p258) target = $region20
        $region19: #{tpu_custom_call.1} parent=11 // pred_region
          _
        $region20: #{tpu_custom_call.1} parent=11 // pred_fallthru
          _
        // Predicated region
        $region21: #{tpu_custom_call.1} parent=11 // pred_check
          %p261 = pneg %p118
        $region22: #{tpu_custom_call.1} parent=11 // pred_check_branch
          %263 = sbr.rel (%p261) target = $region24
        $region23: #{tpu_custom_call.1} parent=11 // pred_region
          _
        $region24: #{tpu_custom_call.1} parent=11 // pred_fallthru
          _
        // Predicated region
        $region25: #{tpu_custom_call.1} parent=11 // pred_check
          %p264 = pneg %p139
        $region26: #{tpu_custom_call.1} parent=11 // pred_check_branch
          %266 = sbr.rel (%p264) target = $region28
        $region27: #{tpu_custom_call.1} parent=11 // pred_region
          _
        $region28: #{tpu_custom_call.1} parent=11 // pred_fallthru
          _
        // Predicated region
        $region29: #{tpu_custom_call.1} parent=11 // pred_check
          %p267 = pneg %p165
        $region30: #{tpu_custom_call.1} parent=11 // pred_check_branch
          %269 = sbr.rel (%p267) target = $region32
        $region31: #{tpu_custom_call.1} parent=11 // pred_region
          %p270 = scmp.lt.s32.totalorder %s27, 0
          %s271 = scalar_select %p270, %s27, 0
          %s272 = smul.addr %s271, 8
          %s273 = scalar_lea.vmem %s5, %s272
        $region32: #{tpu_custom_call.1} parent=11 // pred_fallthru
          _
        // Predicated region
        $region33: #{tpu_custom_call.1} parent=11 // pred_check
          %p274 = pneg %p191
        $region34: #{tpu_custom_call.1} parent=11 // pred_check_branch
          %276 = sbr.rel (%p274) target = $region36
        $region35: #{tpu_custom_call.1} parent=11 // pred_region
          %p277 = scmp.lt.s32.totalorder %s27, 0
          %s278 = scalar_select %p277, %s27, 0
          %s279 = smul.addr %s278, 8
          %s280 = scalar_lea.vmem %s6, %s279
        $region36: #{tpu_custom_call.1} parent=11 // pred_fallthru
          _
        // Predicated region
        $region37: #{tpu_custom_call.1} parent=11 // pred_check
          %p281 = pneg %p212
        $region38: #{tpu_custom_call.1} parent=11 // pred_check_branch
          %283 = sbr.rel (%p281) target = $region40
        $region39: #{tpu_custom_call.1} parent=11 // pred_region
          _
        $region40: #{tpu_custom_call.1} parent=11 // pred_fallthru
          _
      $region12: #{tpu_custom_call.1} parent=5 // pred_fallthru
        _
      %p284 = scmp.lt.s32.totalorder %s17, 2
      // Predicated region
      $region41: #{tpu_custom_call.1} parent=5 // pred_check
        %p285 = pneg %p284
      $region42: #{tpu_custom_call.1} parent=5 // pred_check_branch
        %287 = sbr.rel (%p285) target = $region44
      $region43: #{tpu_custom_call.1} parent=5 // pred_region
        // Predicated region
        $region45: #{tpu_custom_call.1} parent=43 // pred_check
          %p288 = pneg %p49
        $region46: #{tpu_custom_call.1} parent=43 // pred_check_branch
          %290 = sbr.rel (%p288) target = $region48
        $region47: #{tpu_custom_call.1} parent=43 // pred_region
          %p291 = scmp.lt.s32.totalorder %s24, 1
          %s292 = scalar_select %p291, %s24, 1
          %s293 = smul.addr %s292, 2
          %s294 = smul.addr %s293, 8
          %s295 = scalar_lea.vmem %s0, %s294
        $region48: #{tpu_custom_call.1} parent=43 // pred_fallthru
          _
      $region44: #{tpu_custom_call.1} parent=5 // pred_fallthru
        _
      %p296 = scmp.le.s32.totalorder 1, %s17
      %p297 = scmp.lt.s32.totalorder %s17, 3
      %p298 = pnand %p296, %p297
      %p299 = pneg %p298
      // Predicated region
      $region49: #{tpu_custom_call.1} parent=5 // pred_check
        _
      $region50: #{tpu_custom_call.1} parent=5 // pred_check_branch
        %301 = sbr.rel (%p298) target = $region52
      $region51: #{tpu_custom_call.1} parent=5 // pred_region
        %s302 = ssub.s32 %s17, 1
        %p303 = scmp.lt.s32.totalorder %s26, 1
        %s304 = scalar_select %p303, %s26, 1
        %s305 = smul.addr %s304, 2
        %s306 = smul.addr %s305, 8
        %s307 = scalar_lea.vmem %s0, %s306
        %p308 = pneg %p55
        %p309 = pneg %p52
        %p310 = pneg %p76
        %p311 = pneg %p73
        %p312 = pneg %p97
        %p313 = pneg %p94
        %p314 = pneg %p118
        %p315 = pneg %p115
        %p316 = pneg %p139
        %p317 = pneg %p136
        %p318 = scmp.lt.s32.totalorder %s27, 0
        %s319 = scalar_select %p318, %s27, 0
        %s320 = smul.addr %s319, 8
        %s321 = scalar_lea.vmem %s5, %s320
        %p322 = pneg %p165
        %p323 = pneg %p162
        %p324 = scmp.lt.s32.totalorder %s27, 0
        %s325 = scalar_select %p324, %s27, 0
        %s326 = smul.addr %s325, 8
        %s327 = scalar_lea.vmem %s6, %s326
        %p328 = pneg %p191
        %p329 = pneg %p188
        %p330 = pneg %p212
        %p331 = pneg %p209
        %p332 = pneg %p240
        %p333 = pneg %p237
        %s334 = sand.u32 %s227, 1
        %s335 = scalar_lea.sflag [#allocation5], %s334
        %s336 = sand.u32 %s227, 1
        %s337 = smul.addr %s336, 16
        %s338 = scalar_lea.vmem [#allocation4], %s337
        %p339 = scmp.lt.s32.totalorder %s26, 1
        %s340 = scalar_select %p339, %s26, 1
        %s341 = smul.addr %s340, 2
        %s342 = smul.addr %s341, 8
        %s343 = scalar_lea.vmem %s0, %s342
        %p344 = scmp.lt.s32.totalorder %s27, 0
        %s345 = scalar_select %p344, %s27, 0
        %s346 = smul.addr %s345, 8
        %s347 = scalar_lea.vmem %s5, %s346
        %p348 = scmp.lt.s32.totalorder %s27, 0
        %s349 = scalar_select %p348, %s27, 0
        %s350 = smul.addr %s349, 8
        %s351 = scalar_lea.vmem %s6, %s350
        %p352 = scmp.eq.s32.totalorder %s27, 0
        // Predicated region
        $region53: #{tpu_custom_call.1} parent=51 // pred_check
          %p353 = pneg %p352
        $region54: #{tpu_custom_call.1} parent=51 // pred_check_branch
          %355 = sbr.rel (%p353) target = $region56
        $region55: #{tpu_custom_call.1} parent=51 // pred_region
          %v356 = vld [vmem:[%s343] sm:$0xff]
          %v357 = vld [vmem:[%s343 + $0x8] sm:$0xff]
          %v358 = vadd.f32 %v356, %v357
          %359 = vadd.xlane.f32.xlu0 %v358
          %v360 = vpop.xlane.xlu0 %359
          %v361 = vmul.f32 %v356, %v356
          %v362 = vmul.f32 %v357, %v357
          %v363 = vadd.f32 %v361, %v362
          %364 = vadd.xlane.f32.xlu0 %v363
          %v365 = vpop.xlane.xlu0 %364
          %v366 = vld [vmem:[%s2] sm:$0xff]
          %v367 = vld [vmem:[%s1] sm:$0xf]
          %vm368 = vcmask 64512
          %v370 = vsel %vm368, %v367, 0
          %372 = vmatprep.subr.mxu0 0.0
          %373 = vmatpush1.msra.mxu0 0.0
          %374 = vmatprep.subr.mxu0 0.0
          %375 = vmatpush1.msra.mxu0 0.0
          %376 = vmatprep.subr.mxu0 0.0
          %377 = vmatpush1.msra.mxu0 0.0
          %378 = vmatprep.subr.mxu0 0.0
          %379 = vmatpush1.msra.mxu0 0.0
          %380 = vmatprep.subr.mxu0 0.0
          %381 = vmatpush1.msra.mxu0 0.0
          %382 = vmatprep.subr.mxu0 0.0
          %383 = vmatpush1.msra.mxu0 0.0
          %384 = vmatprep.subr.mxu0 0.0
          %385 = vmatpush1.msra.mxu0 0.0
          %386 = vmatprep.subr.mxu0 0.0
          %387 = vmatpush1.msra.mxu0 0.0
          %388 = vmatprep.subr.mxu0 0.0
          %389 = vmatpush1.msra.mxu0 0.0
          %390 = vmatprep.subr.mxu0 0.0
          %391 = vmatpush1.msra.mxu0 0.0
          %392 = vmatprep.subr.mxu0 0.0
          %393 = vmatpush1.msra.mxu0 0.0
          %394 = vmatprep.subr.mxu0 0.0
          %395 = vmatpush1.msra.mxu0 0.0
          %396 = vmatprep.subr.mxu0 0.0
          %397 = vmatpush1.msra.mxu0 0.0
          %398 = vmatprep.subr.mxu0 0.0
          %399 = vmatpush1.msra.mxu0 0.0
          %400 = vmatprep.subr.mxu0 0.0
          %401 = vmatpush1.msra.mxu0 0.0
          %402 = vmatprep.subr.mxu0 0.0
          %403 = vmatpush1.msra.mxu0 %v360
          %404 = vmatprep.subr.mxu0 0.0
          %405 = vmatpush2.msra.mxu0 0.0
          %406 = vmatprep.subr.mxu0 0.0
          %407 = vmatpush2.msra.mxu0 0.0
          %408 = vmatprep.subr.mxu0 0.0
          %409 = vmatpush2.msra.mxu0 0.0
          %410 = vmatprep.subr.mxu0 0.0
          %411 = vmatpush2.msra.mxu0 0.0
          %412 = vmatprep.subr.mxu0 0.0
          %413 = vmatpush2.msra.mxu0 0.0
          %414 = vmatprep.subr.mxu0 0.0
          %415 = vmatpush2.msra.mxu0 0.0
          %416 = vmatprep.subr.mxu0 0.0
          %417 = vmatpush2.msra.mxu0 0.0
          %418 = vmatprep.subr.mxu0 0.0
          %419 = vmatpush2.msra.mxu0 0.0
          %420 = vmatprep.subr.mxu0 0.0
          %421 = vmatpush2.msra.mxu0 0.0
          %422 = vmatprep.subr.mxu0 0.0
          %423 = vmatpush2.msra.mxu0 0.0
          %424 = vmatprep.subr.mxu0 0.0
          %425 = vmatpush2.msra.mxu0 0.0
          %426 = vmatprep.subr.mxu0 0.0
          %427 = vmatpush2.msra.mxu0 0.0
          %428 = vmatprep.subr.mxu0 0.0
          %429 = vmatpush2.msra.mxu0 0.0
          %430 = vmatprep.subr.mxu0 0.0
          %431 = vmatpush2.msra.mxu0 0.0
          %432 = vmatprep.subr.mxu0 0.0
          %433 = vmatpush2.msra.mxu0 0.0
          %434 = vmatprep.subr.mxu0 0.0
          %435 = vmatpush2.msra.mxu0 0.0
          %436 = vmatprep.mubr.f32.mxu0 0.0
          %437 = vmatmul.mubr.f32.gmra.mxu0 %v370
          %v438 = vpop.f32.mrf.mxu0
          %v439 = vadd.f32 0.0, %v438
          %v440 = vpop.f32.mrf.mxu0
          %441 = vdwg.mxu0
          %vm442 = vcmask 31744
          %v444 = vsel %vm442, %v366, 0
          %vm446 = vcmask 1043456
          %v448 = vsel %vm446, %v439, 0
          %450 = vmatprep.subr.mxu0 0.0
          %451 = vmatpush1.msra.mxu0 0.0
          %452 = vmatprep.subr.mxu0 0.0
          %453 = vmatpush1.msra.mxu0 0.0
          %454 = vmatprep.subr.mxu0 0.0
          %455 = vmatpush1.msra.mxu0 0.0
          %456 = vmatprep.subr.mxu0 0.0
          %457 = vmatpush1.msra.mxu0 0.0
          %458 = vmatprep.subr.mxu0 0.0
          %459 = vmatpush1.msra.mxu0 0.0
          %460 = vmatprep.subr.mxu0 0.0
          %461 = vmatpush1.msra.mxu0 0.0
          %462 = vmatprep.subr.mxu0 0.0
          %463 = vmatpush1.msra.mxu0 0.0
          %464 = vmatprep.subr.mxu0 0.0
          %465 = vmatpush1.msra.mxu0 0.0
          %466 = vmatprep.subr.mxu0 0.0
          %467 = vmatpush1.msra.mxu0 0.0
          %468 = vmatprep.subr.mxu0 0.0
          %469 = vmatpush1.msra.mxu0 0.0
          %470 = vmatprep.subr.mxu0 0.0
          %471 = vmatpush1.msra.mxu0 0.0
          %472 = vmatprep.subr.mxu0 0.0
          %473 = vmatpush1.msra.mxu0 0.0
          %474 = vmatprep.subr.mxu0 0.0
          %475 = vmatpush1.msra.mxu0 0.0
          %476 = vmatprep.subr.mxu0 0.0
          %477 = vmatpush1.msra.mxu0 0.0
          %478 = vmatprep.subr.mxu0 0.0
          %479 = vmatpush1.msra.mxu0 0.0
          %480 = vmatprep.subr.mxu0 0.0
          %481 = vmatpush1.msra.mxu0 %v448
          %482 = vmatprep.subr.mxu0 0.0
          %483 = vmatpush2.msra.mxu0 0.0
          %484 = vmatprep.subr.mxu0 0.0
          %485 = vmatpush2.msra.mxu0 0.0
          %486 = vmatprep.subr.mxu0 0.0
          %487 = vmatpush2.msra.mxu0 0.0
          %488 = vmatprep.subr.mxu0 0.0
          %489 = vmatpush2.msra.mxu0 0.0
          %490 = vmatprep.subr.mxu0 0.0
          %491 = vmatpush2.msra.mxu0 0.0
          %492 = vmatprep.subr.mxu0 0.0
          %493 = vmatpush2.msra.mxu0 0.0
          %494 = vmatprep.subr.mxu0 0.0
          %495 = vmatpush2.msra.mxu0 0.0
          %496 = vmatprep.subr.mxu0 0.0
          %497 = vmatpush2.msra.mxu0 0.0
          %498 = vmatprep.subr.mxu0 0.0
          %499 = vmatpush2.msra.mxu0 0.0
          %500 = vmatprep.subr.mxu0 0.0
          %501 = vmatpush2.msra.mxu0 0.0
          %502 = vmatprep.subr.mxu0 0.0
          %503 = vmatpush2.msra.mxu0 0.0
          %504 = vmatprep.subr.mxu0 0.0
          %505 = vmatpush2.msra.mxu0 0.0
          %506 = vmatprep.subr.mxu0 0.0
          %507 = vmatpush2.msra.mxu0 0.0
          %508 = vmatprep.subr.mxu0 0.0
          %509 = vmatpush2.msra.mxu0 0.0
          %510 = vmatprep.subr.mxu0 0.0
          %511 = vmatpush2.msra.mxu0 0.0
          %512 = vmatprep.subr.mxu0 0.0
          %513 = vmatpush2.msra.mxu0 0.0
          %514 = vmatprep.mubr.f32.mxu0 0.0
          %515 = vmatmul.mubr.f32.gmra.mxu0 %v444
          %v516 = vpop.f32.mrf.mxu0
          %v517 = vadd.f32 0.0, %v516
          %v518 = vpop.f32.mrf.mxu0
          %519 = vdwg.mxu0
          %520 = vmatprep.subr.mxu0 0.0
          %521 = vmatpush1.msra.mxu0 0.0
          %522 = vmatprep.subr.mxu0 0.0
          %523 = vmatpush1.msra.mxu0 0.0
          %524 = vmatprep.subr.mxu0 0.0
          %525 = vmatpush1.msra.mxu0 0.0
          %526 = vmatprep.subr.mxu0 0.0
          %527 = vmatpush1.msra.mxu0 0.0
          %528 = vmatprep.subr.mxu0 0.0
          %529 = vmatpush1.msra.mxu0 0.0
          %530 = vmatprep.subr.mxu0 0.0
          %531 = vmatpush1.msra.mxu0 0.0
          %532 = vmatprep.subr.mxu0 0.0
          %533 = vmatpush1.msra.mxu0 0.0
          %534 = vmatprep.subr.mxu0 0.0
          %535 = vmatpush1.msra.mxu0 0.0
          %536 = vmatprep.subr.mxu0 0.0
          %537 = vmatpush1.msra.mxu0 0.0
          %538 = vmatprep.subr.mxu0 0.0
          %539 = vmatpush1.msra.mxu0 0.0
          %540 = vmatprep.subr.mxu0 0.0
          %541 = vmatpush1.msra.mxu0 0.0
          %542 = vmatprep.subr.mxu0 0.0
          %543 = vmatpush1.msra.mxu0 0.0
          %544 = vmatprep.subr.mxu0 0.0
          %545 = vmatpush1.msra.mxu0 0.0
          %546 = vmatprep.subr.mxu0 0.0
          %547 = vmatpush1.msra.mxu0 0.0
          %548 = vmatprep.subr.mxu0 0.0
          %549 = vmatpush1.msra.mxu0 0.0
          %550 = vmatprep.subr.mxu0 0.0
          %551 = vmatpush1.msra.mxu0 %v365
          %552 = vmatprep.subr.mxu0 0.0
          %553 = vmatpush2.msra.mxu0 0.0
          %554 = vmatprep.subr.mxu0 0.0
          %555 = vmatpush2.msra.mxu0 0.0
          %556 = vmatprep.subr.mxu0 0.0
          %557 = vmatpush2.msra.mxu0 0.0
          %558 = vmatprep.subr.mxu0 0.0
          %559 = vmatpush2.msra.mxu0 0.0
          %560 = vmatprep.subr.mxu0 0.0
          %561 = vmatpush2.msra.mxu0 0.0
          %562 = vmatprep.subr.mxu0 0.0
          %563 = vmatpush2.msra.mxu0 0.0
          %564 = vmatprep.subr.mxu0 0.0
          %565 = vmatpush2.msra.mxu0 0.0
          %566 = vmatprep.subr.mxu0 0.0
          %567 = vmatpush2.msra.mxu0 0.0
          %568 = vmatprep.subr.mxu0 0.0
          %569 = vmatpush2.msra.mxu0 0.0
          %570 = vmatprep.subr.mxu0 0.0
          %571 = vmatpush2.msra.mxu0 0.0
          %572 = vmatprep.subr.mxu0 0.0
          %573 = vmatpush2.msra.mxu0 0.0
          %574 = vmatprep.subr.mxu0 0.0
          %575 = vmatpush2.msra.mxu0 0.0
          %576 = vmatprep.subr.mxu0 0.0
          %577 = vmatpush2.msra.mxu0 0.0
          %578 = vmatprep.subr.mxu0 0.0
          %579 = vmatpush2.msra.mxu0 0.0
          %580 = vmatprep.subr.mxu0 0.0
          %581 = vmatpush2.msra.mxu0 0.0
          %582 = vmatprep.subr.mxu0 0.0
          %583 = vmatpush2.msra.mxu0 0.0
          %584 = vmatprep.mubr.f32.mxu0 0.0
          %585 = vmatmul.mubr.f32.gmra.mxu0 %v370
          %v586 = vpop.f32.mrf.mxu0
          %v587 = vadd.f32 0.0, %v586
          %v588 = vpop.f32.mrf.mxu0
          %589 = vdwg.mxu0
          %v591 = vsel %vm446, %v587, 0
          %593 = vmatprep.subr.mxu0 0.0
          %594 = vmatpush1.msra.mxu0 0.0
          %595 = vmatprep.subr.mxu0 0.0
          %596 = vmatpush1.msra.mxu0 0.0
          %597 = vmatprep.subr.mxu0 0.0
          %598 = vmatpush1.msra.mxu0 0.0
          %599 = vmatprep.subr.mxu0 0.0
          %600 = vmatpush1.msra.mxu0 0.0
          %601 = vmatprep.subr.mxu0 0.0
          %602 = vmatpush1.msra.mxu0 0.0
          %603 = vmatprep.subr.mxu0 0.0
          %604 = vmatpush1.msra.mxu0 0.0
          %605 = vmatprep.subr.mxu0 0.0
          %606 = vmatpush1.msra.mxu0 0.0
          %607 = vmatprep.subr.mxu0 0.0
          %608 = vmatpush1.msra.mxu0 0.0
          %609 = vmatprep.subr.mxu0 0.0
          %610 = vmatpush1.msra.mxu0 0.0
          %611 = vmatprep.subr.mxu0 0.0
          %612 = vmatpush1.msra.mxu0 0.0
          %613 = vmatprep.subr.mxu0 0.0
          %614 = vmatpush1.msra.mxu0 0.0
          %615 = vmatprep.subr.mxu0 0.0
          %616 = vmatpush1.msra.mxu0 0.0
          %617 = vmatprep.subr.mxu0 0.0
          %618 = vmatpush1.msra.mxu0 0.0
          %619 = vmatprep.subr.mxu0 0.0
          %620 = vmatpush1.msra.mxu0 0.0
          %621 = vmatprep.subr.mxu0 0.0
          %622 = vmatpush1.msra.mxu0 0.0
          %623 = vmatprep.subr.mxu0 0.0
          %624 = vmatpush1.msra.mxu0 %v591
          %625 = vmatprep.subr.mxu0 0.0
          %626 = vmatpush2.msra.mxu0 0.0
          %627 = vmatprep.subr.mxu0 0.0
          %628 = vmatpush2.msra.mxu0 0.0
          %629 = vmatprep.subr.mxu0 0.0
          %630 = vmatpush2.msra.mxu0 0.0
          %631 = vmatprep.subr.mxu0 0.0
          %632 = vmatpush2.msra.mxu0 0.0
          %633 = vmatprep.subr.mxu0 0.0
          %634 = vmatpush2.msra.mxu0 0.0
          %635 = vmatprep.subr.mxu0 0.0
          %636 = vmatpush2.msra.mxu0 0.0
          %637 = vmatprep.subr.mxu0 0.0
          %638 = vmatpush2.msra.mxu0 0.0
          %639 = vmatprep.subr.mxu0 0.0
          %640 = vmatpush2.msra.mxu0 0.0
          %641 = vmatprep.subr.mxu0 0.0
          %642 = vmatpush2.msra.mxu0 0.0
          %643 = vmatprep.subr.mxu0 0.0
          %644 = vmatpush2.msra.mxu0 0.0
          %645 = vmatprep.subr.mxu0 0.0
          %646 = vmatpush2.msra.mxu0 0.0
          %647 = vmatprep.subr.mxu0 0.0
          %648 = vmatpush2.msra.mxu0 0.0
          %649 = vmatprep.subr.mxu0 0.0
          %650 = vmatpush2.msra.mxu0 0.0
          %651 = vmatprep.subr.mxu0 0.0
          %652 = vmatpush2.msra.mxu0 0.0
          %653 = vmatprep.subr.mxu0 0.0
          %654 = vmatpush2.msra.mxu0 0.0
          %655 = vmatprep.subr.mxu0 0.0
          %656 = vmatpush2.msra.mxu0 0.0
          %657 = vmatprep.mubr.f32.mxu0 0.0
          %658 = vmatmul.mubr.f32.gmra.mxu0 %v444
          %v659 = vpop.f32.mrf.mxu0
          %v660 = vadd.f32 0.0, %v659
          %v661 = vpop.f32.mrf.mxu0
          %662 = vdwg.mxu0
          %v663 = vmul.f32 %v517, %v517
          %v664 = vsub.f32 %v660, %v663
          %v665 = vmax.f32 %v664, 0.0
          %v666 = vadd.f32 %v665, 1e-05
          %v667 = vrsqrt.pop %v666
          %669 = vset.pattern.permute.xlu0 0
          %670 = vperm.xlu0 %669, %v517
          %v671 = vpop.permute.xlu0 %670
          %v673 = vsub.f32 %v356, %v671
          %v674 = vsub.f32 %v357, %v671
          %v675 = vld [vmem:[%s3] sm:$0xff]
          %v676 = vmul.f32 %v667, %v675
          %678 = vset.pattern.permute.xlu0 0
          %679 = vperm.xlu0 %678, %v676
          %v680 = vpop.permute.xlu0 %679
          %v682 = vmul.f32 %v673, %v680
          %v683 = vmul.f32 %v674, %v680
          %v684 = vld [vmem:[%s4] sm:$0xff]
          %686 = vset.pattern.permute.xlu0 0
          %687 = vperm.xlu0 %686, %v684
          %v688 = vpop.permute.xlu0 %687
          %v690 = vadd.f32 %v682, %v688
          %v691 = vadd.f32 %v683, %v688
          %v692 = vsub.f32 0.0, %v690
          %v693 = vsub.f32 0.0, %v691
          %v694 = vmul.f32 %v692, 1.442695
          %v695 = vpow.pop %v694
          %v696 = vmul.f32 %v693, 1.442695
          %v697 = vpow.pop %v696
          %v698 = vadd.f32 %v695, 1.0
          %v699 = vadd.f32 %v697, 1.0
          %v700 = vrcp.pop %v698
          %v701 = vmul.f32 1.0, %v700
          %v702 = vrcp.pop %v699
          %v703 = vmul.f32 1.0, %v702
          %v704 = vmul.f32 %v690, %v701
          %v705 = vmul.f32 %v691, %v703
          %vm706 = vcmask 138240
          %707 = vst.msk [vmem:[#allocation2] sm:$0xff] %vm706, 0.0
          %710 = vrot.lane.b32.xlu0 %v704, 17
          %v711 = vpop.permute.xlu0 %710
          %712 = vrot.lane.b32.xlu0 %v705, 17
          %v713 = vpop.permute.xlu0 %712
          %v714 = vsel %vm706, %v711, %v713
          %vm718 = vcmask 1047688
          %719 = vst.msk [vmem:[#allocation2] sm:$0xff] %vm718, %v711
          %720 = vst [vmem:[#allocation2 + $0x8] sm:$0xff] %v714
          %721 = vst.msk [vmem:[#allocation2 + $0x10] sm:$0xff] %vm706, %v713
          %vm722 = vcmask 277640
          %723 = vst.msk [vmem:[#allocation2 + $0x10] sm:$0xff] %vm722, 0.0
          %v724 = vld [vmem:[%s7] ss:$2 sm:$0x3]
          %s725 = scalar_lea.vmem %s7, 1
          %v726 = vld [vmem:[%s725] ss:$2 sm:$0x3]
          %v727 = vld [vmem:[#allocation2] sm:$0xff]
          %v728 = vld [vmem:[#allocation2 + $0x8] sm:$0xff]
          %v730 = vlaneseq
          %v731 = vshrl.u32 %v730, 7
          %v732 = vsub.s32 0, %v731
          %v733 = vrot.slane %v724, %v732
          %v734 = vlaneseq
          %v735 = vshrl.u32 %v734, 7
          %v736 = vsub.s32 1, %v735
          %v737 = vrot.slane %v724, %v736
          %v740 = vmul.f32 %v727, %v733
          %v741 = vmul.f32 %v728, %v737
          %742 = vst [vmem:[#allocation3] sm:$0xff] %v740
          %743 = vst [vmem:[#allocation3 + $0x8] sm:$0xff] %v741
          %v744 = vld [vmem:[#allocation2] sm:$0xff]
          %v745 = vld [vmem:[#allocation2 + $0x8] sm:$0xff]
          %v746 = vld [vmem:[#allocation2 + $0x10] sm:$0xff]
          %750 = vrot.lane.b32.xlu0 %v744, 127
          %v751 = vpop.permute.xlu0 %750
          %752 = vrot.lane.b32.xlu0 %v745, 127
          %v753 = vpop.permute.xlu0 %752
          %754 = vrot.lane.b32.xlu0 %v746, 127
          %v755 = vpop.permute.xlu0 %754
          %vm756 = vcmask 1039360
          %v757 = vsel %vm756, %v751, %v753
          %v758 = vsel %vm756, %v753, %v755
          %s761 = scalar_lea.vmem [#allocation3], 16
          %762 = vst [vmem:[%s761] sm:$0xff] %v757
          %763 = vst [vmem:[%s761 + $0x8] sm:$0xff] %v758
          %v764 = vld [vmem:[#allocation2] sm:$0xff]
          %v765 = vld [vmem:[#allocation2 + $0x8] sm:$0xff]
          %v766 = vld [vmem:[#allocation2 + $0x10] sm:$0xff]
          %v768 = vlaneseq
          %v769 = vshrl.u32 %v768, 7
          %v770 = vsub.s32 0, %v769
          %v771 = vrot.slane %v726, %v770
          %v772 = vlaneseq
          %v773 = vshrl.u32 %v772, 7
          %v774 = vsub.s32 1, %v773
          %v775 = vrot.slane %v726, %v774
          %776 = vrot.lane.b32.xlu0 %v771, 2
          %v777 = vpop.permute.xlu0 %776
          %778 = vrot.lane.b32.xlu0 %v775, 2
          %v779 = vpop.permute.xlu0 %778
          %vm780 = vcmask 15360
          %v781 = vsel %vm780, %v777, %v779
          %v785 = vmul.f32 %v764, %v777
          %v786 = vmul.f32 %v765, %v781
          %v787 = vmul.f32 %v766, %v779
          %791 = vrot.lane.b32.xlu0 %v785, 126
          %v792 = vpop.permute.xlu0 %791
          %793 = vrot.lane.b32.xlu0 %v786, 126
          %v794 = vpop.permute.xlu0 %793
          %795 = vrot.lane.b32.xlu0 %v787, 126
          %v796 = vpop.permute.xlu0 %795
          %vm797 = vcmask 1031168
          %v798 = vsel %vm797, %v792, %v794
          %v799 = vsel %vm797, %v794, %v796
          %s802 = scalar_lea.vmem [#allocation3], 32
          %803 = vst [vmem:[%s802] sm:$0xff] %v798
          %804 = vst [vmem:[%s802 + $0x8] sm:$0xff] %v799
          %v805 = vld [vmem:[#allocation2] sm:$0xff]
          %v806 = vld [vmem:[#allocation2 + $0x8] sm:$0xff]
          %v807 = vld [vmem:[#allocation2 + $0x10] sm:$0xff]
          %808 = vrot.lane.b32.xlu0 %v733, 16
          %v809 = vpop.permute.xlu0 %808
          %810 = vrot.lane.b32.xlu0 %v737, 16
          %v811 = vpop.permute.xlu0 %810
          %vm812 = vcmask 130048
          %v813 = vsel %vm812, %v809, %v811
          %v817 = vmul.f32 %v805, %v809
          %v818 = vmul.f32 %v806, %v813
          %v819 = vmul.f32 %v807, %v811
          %823 = vrot.lane.b32.xlu0 %v817, 112
          %v824 = vpop.permute.xlu0 %823
          %825 = vrot.lane.b32.xlu0 %v818, 112
          %v826 = vpop.permute.xlu0 %825
          %827 = vrot.lane.b32.xlu0 %v819, 112
          %v828 = vpop.permute.xlu0 %827
          %vm829 = vcmask 916480
          %v830 = vsel %vm829, %v824, %v826
          %v831 = vsel %vm829, %v826, %v828
          %s834 = scalar_lea.vmem [#allocation3], 48
          %835 = vst [vmem:[%s834] sm:$0xff] %v830
          %836 = vst [vmem:[%s834 + $0x8] sm:$0xff] %v831
          %v837 = vld [vmem:[#allocation2] sm:$0xff]
          %v838 = vld [vmem:[#allocation2 + $0x8] sm:$0xff]
          %v839 = vld [vmem:[#allocation2 + $0x10] sm:$0xff]
          %843 = vrot.lane.b32.xlu0 %v837, 111
          %v844 = vpop.permute.xlu0 %843
          %845 = vrot.lane.b32.xlu0 %v838, 111
          %v846 = vpop.permute.xlu0 %845
          %847 = vrot.lane.b32.xlu0 %v839, 111
          %v848 = vpop.permute.xlu0 %847
          %vm849 = vcmask 908288
          %v850 = vsel %vm849, %v844, %v846
          %v851 = vsel %vm849, %v846, %v848
          %s854 = scalar_lea.vmem [#allocation3], 64
          %855 = vst [vmem:[%s854] sm:$0xff] %v850
          %856 = vst [vmem:[%s854 + $0x8] sm:$0xff] %v851
          %v857 = vld [vmem:[#allocation2] sm:$0xff]
          %v858 = vld [vmem:[#allocation2 + $0x8] sm:$0xff]
          %v859 = vld [vmem:[#allocation2 + $0x10] sm:$0xff]
          %860 = vrot.lane.b32.xlu0 %v771, 18
          %v861 = vpop.permute.xlu0 %860
          %862 = vrot.lane.b32.xlu0 %v775, 18
          %v863 = vpop.permute.xlu0 %862
          %vm864 = vcmask 146432
          %v865 = vsel %vm864, %v861, %v863
          %v869 = vmul.f32 %v857, %v861
          %v870 = vmul.f32 %v858, %v865
          %v871 = vmul.f32 %v859, %v863
          %875 = vrot.lane.b32.xlu0 %v869, 110
          %v876 = vpop.permute.xlu0 %875
          %877 = vrot.lane.b32.xlu0 %v870, 110
          %v878 = vpop.permute.xlu0 %877
          %879 = vrot.lane.b32.xlu0 %v871, 110
          %v880 = vpop.permute.xlu0 %879
          %vm881 = vcmask 900096
          %v882 = vsel %vm881, %v876, %v878
          %v883 = vsel %vm881, %v878, %v880
          %s886 = scalar_lea.vmem [#allocation3], 80
          %887 = vst [vmem:[%s886] sm:$0xff] %v882
          %888 = vst [vmem:[%s886 + $0x8] sm:$0xff] %v883
          %v889 = vld [vmem:[#allocation2] sm:$0xff]
          %v890 = vld [vmem:[#allocation2 + $0x8] sm:$0xff]
          %v891 = vld [vmem:[#allocation2 + $0x10] sm:$0xff]
          %892 = vrot.lane.b32.xlu0 %v733, 32
          %v893 = vpop.permute.xlu0 %892
          %894 = vrot.lane.b32.xlu0 %v737, 32
          %v895 = vpop.permute.xlu0 %894
          %vm896 = vcmask 261120
          %v897 = vsel %vm896, %v893, %v895
          %v901 = vmul.f32 %v889, %v893
          %v902 = vmul.f32 %v890, %v897
          %v903 = vmul.f32 %v891, %v895
          %907 = vrot.lane.b32.xlu0 %v901, 96
          %v908 = vpop.permute.xlu0 %907
          %909 = vrot.lane.b32.xlu0 %v902, 96
          %v910 = vpop.permute.xlu0 %909
          %911 = vrot.lane.b32.xlu0 %v903, 96
          %v912 = vpop.permute.xlu0 %911
          %vm913 = vcmask 785408
          %v914 = vsel %vm913, %v908, %v910
          %v915 = vsel %vm913, %v910, %v912
          %s918 = scalar_lea.vmem [#allocation3], 96
          %919 = vst [vmem:[%s918] sm:$0xff] %v914
          %920 = vst [vmem:[%s918 + $0x8] sm:$0xff] %v915
          %v921 = vld [vmem:[#allocation2] sm:$0xff]
          %v922 = vld [vmem:[#allocation2 + $0x8] sm:$0xff]
          %v923 = vld [vmem:[#allocation2 + $0x10] sm:$0xff]
          %927 = vrot.lane.b32.xlu0 %v921, 95
          %v928 = vpop.permute.xlu0 %927
          %929 = vrot.lane.b32.xlu0 %v922, 95
          %v930 = vpop.permute.xlu0 %929
          %931 = vrot.lane.b32.xlu0 %v923, 95
          %v932 = vpop.permute.xlu0 %931
          %vm933 = vcmask 777216
          %v934 = vsel %vm933, %v928, %v930
          %v935 = vsel %vm933, %v930, %v932
          %s938 = scalar_lea.vmem [#allocation3], 112
          %939 = vst [vmem:[%s938] sm:$0xff] %v934
          %940 = vst [vmem:[%s938 + $0x8] sm:$0xff] %v935
          %v941 = vld [vmem:[#allocation2] sm:$0xff]
          %v942 = vld [vmem:[#allocation2 + $0x8] sm:$0xff]
          %v943 = vld [vmem:[#allocation2 + $0x10] sm:$0xff]
          %944 = vrot.lane.b32.xlu0 %v771, 34
          %v945 = vpop.permute.xlu0 %944
          %946 = vrot.lane.b32.xlu0 %v775, 34
          %v947 = vpop.permute.xlu0 %946
          %vm948 = vcmask 277504
          %v949 = vsel %vm948, %v945, %v947
          %v953 = vmul.f32 %v941, %v945
          %v954 = vmul.f32 %v942, %v949
          %v955 = vmul.f32 %v943, %v947
          %959 = vrot.lane.b32.xlu0 %v953, 94
          %v960 = vpop.permute.xlu0 %959
          %961 = vrot.lane.b32.xlu0 %v954, 94
          %v962 = vpop.permute.xlu0 %961
          %963 = vrot.lane.b32.xlu0 %v955, 94
          %v964 = vpop.permute.xlu0 %963
          %vm965 = vcmask 769024
          %v966 = vsel %vm965, %v960, %v962
          %v967 = vsel %vm965, %v962, %v964
          %s970 = scalar_lea.vmem [#allocation3], 128
          %971 = vst [vmem:[%s970] sm:$0xff] %v966
          %972 = vst [vmem:[%s970 + $0x8] sm:$0xff] %v967
        $region56: #{tpu_custom_call.1} parent=51 // pred_fallthru
          _
        %v973 = vld [vmem:[%s347] sm:$0xff]
        %v974 = vld [vmem:[#allocation3] sm:$0xff]
        %v975 = vld [vmem:[#allocation3 + $0x8] sm:$0xff]
        %s976 = scalar_lea.vmem %s347, 8
        %v977 = vld [vmem:[%s976] sm:$0xff]
        %s978 = scalar_lea.vmem [#allocation3], 16
        %v979 = vld [vmem:[%s978] sm:$0xff]
        %v980 = vld [vmem:[%s978 + $0x8] sm:$0xff]
        %vm981 = vcmask 64512
        %v983 = vsel %vm981, %v977, 0
        %985 = vmatprep.subr.mxu0 0.0
        %986 = vmatpush1.msra.mxu0 0.0
        %987 = vmatprep.subr.mxu0 0.0
        %988 = vmatpush1.msra.mxu0 0.0
        %989 = vmatprep.subr.mxu0 0.0
        %990 = vmatpush1.msra.mxu0 0.0
        %991 = vmatprep.subr.mxu0 0.0
        %992 = vmatpush1.msra.mxu0 0.0
        %993 = vmatprep.subr.mxu0 0.0
        %994 = vmatpush1.msra.mxu0 0.0
        %995 = vmatprep.subr.mxu0 0.0
        %996 = vmatpush1.msra.mxu0 0.0
        %997 = vmatprep.subr.mxu0 0.0
        %998 = vmatpush1.msra.mxu0 0.0
        %999 = vmatprep.subr.mxu0 0.0
        %1000 = vmatpush1.msra.mxu0 0.0
        %1001 = vmatprep.subr.mxu0 0.0
        %1002 = vmatpush1.msra.mxu0 0.0
        %1003 = vmatprep.subr.mxu0 0.0
        %1004 = vmatpush1.msra.mxu0 0.0
        %1005 = vmatprep.subr.mxu0 0.0
        %1006 = vmatpush1.msra.mxu0 0.0
        %1007 = vmatprep.subr.mxu0 0.0
        %1008 = vmatpush1.msra.mxu0 0.0
        %1009 = vmatprep.subr.mxu0 0.0
        %1010 = vmatpush1.msra.mxu0 0.0
        %1011 = vmatprep.subr.mxu0 0.0
        %1012 = vmatpush1.msra.mxu0 0.0
        %1013 = vmatprep.subr.mxu0 0.0
        %1014 = vmatpush1.msra.mxu0 0.0
        %1015 = vmatprep.subr.mxu0 %v980
        %1016 = vmatpush1.msra.mxu0 %v979
        %1017 = vmatprep.subr.mxu0 0.0
        %1018 = vmatpush2.msra.mxu0 0.0
        %1019 = vmatprep.subr.mxu0 0.0
        %1020 = vmatpush2.msra.mxu0 0.0
        %1021 = vmatprep.subr.mxu0 0.0
        %1022 = vmatpush2.msra.mxu0 0.0
        %1023 = vmatprep.subr.mxu0 0.0
        %1024 = vmatpush2.msra.mxu0 0.0
        %1025 = vmatprep.subr.mxu0 0.0
        %1026 = vmatpush2.msra.mxu0 0.0
        %1027 = vmatprep.subr.mxu0 0.0
        %1028 = vmatpush2.msra.mxu0 0.0
        %1029 = vmatprep.subr.mxu0 0.0
        %1030 = vmatpush2.msra.mxu0 0.0
        %1031 = vmatprep.subr.mxu0 0.0
        %1032 = vmatpush2.msra.mxu0 0.0
        %1033 = vmatprep.subr.mxu0 0.0
        %1034 = vmatpush2.msra.mxu0 0.0
        %1035 = vmatprep.subr.mxu0 0.0
        %1036 = vmatpush2.msra.mxu0 0.0
        %1037 = vmatprep.subr.mxu0 0.0
        %1038 = vmatpush2.msra.mxu0 0.0
        %1039 = vmatprep.subr.mxu0 0.0
        %1040 = vmatpush2.msra.mxu0 0.0
        %1041 = vmatprep.subr.mxu0 0.0
        %1042 = vmatpush2.msra.mxu0 0.0
        %1043 = vmatprep.subr.mxu0 0.0
        %1044 = vmatpush2.msra.mxu0 0.0
        %1045 = vmatprep.subr.mxu0 0.0
        %1046 = vmatpush2.msra.mxu0 0.0
        %1047 = vmatprep.subr.mxu0 0.0
        %1048 = vmatpush2.msra.mxu0 0.0
        %1049 = vmatprep.mubr.f32.mxu0 0.0
        %1050 = vmatmul.mubr.f32.gmra.mxu0 %v983
        %v1051 = vpop.f32.mrf.mxu0
        %v1052 = vadd.f32 0.0, %v1051
        %v1053 = vpop.f32.mrf.mxu0
        %v1054 = vadd.f32 0.0, %v1053
        %1055 = vdwg.mxu0
        %v1057 = vsel %vm981, %v973, 0
        %1059 = vmatprep.subr.mxu0 0.0
        %1060 = vmatpush1.msra.mxu0 0.0
        %1061 = vmatprep.subr.mxu0 0.0
        %1062 = vmatpush1.msra.mxu0 0.0
        %1063 = vmatprep.subr.mxu0 0.0
        %1064 = vmatpush1.msra.mxu0 0.0
        %1065 = vmatprep.subr.mxu0 0.0
        %1066 = vmatpush1.msra.mxu0 0.0
        %1067 = vmatprep.subr.mxu0 0.0
        %1068 = vmatpush1.msra.mxu0 0.0
        %1069 = vmatprep.subr.mxu0 0.0
        %1070 = vmatpush1.msra.mxu0 0.0
        %1071 = vmatprep.subr.mxu0 0.0
        %1072 = vmatpush1.msra.mxu0 0.0
        %1073 = vmatprep.subr.mxu0 0.0
        %1074 = vmatpush1.msra.mxu0 0.0
        %1075 = vmatprep.subr.mxu0 0.0
        %1076 = vmatpush1.msra.mxu0 0.0
        %1077 = vmatprep.subr.mxu0 0.0
        %1078 = vmatpush1.msra.mxu0 0.0
        %1079 = vmatprep.subr.mxu0 0.0
        %1080 = vmatpush1.msra.mxu0 0.0
        %1081 = vmatprep.subr.mxu0 0.0
        %1082 = vmatpush1.msra.mxu0 0.0
        %1083 = vmatprep.subr.mxu0 0.0
        %1084 = vmatpush1.msra.mxu0 0.0
        %1085 = vmatprep.subr.mxu0 0.0
        %1086 = vmatpush1.msra.mxu0 0.0
        %1087 = vmatprep.subr.mxu0 0.0
        %1088 = vmatpush1.msra.mxu0 0.0
        %1089 = vmatprep.subr.mxu0 %v975
        %1090 = vmatpush1.msra.mxu0 %v974
        %1091 = vmatprep.subr.mxu0 0.0
        %1092 = vmatpush2.msra.mxu0 0.0
        %1093 = vmatprep.subr.mxu0 0.0
        %1094 = vmatpush2.msra.mxu0 0.0
        %1095 = vmatprep.subr.mxu0 0.0
        %1096 = vmatpush2.msra.mxu0 0.0
        %1097 = vmatprep.subr.mxu0 0.0
        %1098 = vmatpush2.msra.mxu0 0.0
        %1099 = vmatprep.subr.mxu0 0.0
        %1100 = vmatpush2.msra.mxu0 0.0
        %1101 = vmatprep.subr.mxu0 0.0
        %1102 = vmatpush2.msra.mxu0 0.0
        %1103 = vmatprep.subr.mxu0 0.0
        %1104 = vmatpush2.msra.mxu0 0.0
        %1105 = vmatprep.subr.mxu0 0.0
        %1106 = vmatpush2.msra.mxu0 0.0
        %1107 = vmatprep.subr.mxu0 0.0
        %1108 = vmatpush2.msra.mxu0 0.0
        %1109 = vmatprep.subr.mxu0 0.0
        %1110 = vmatpush2.msra.mxu0 0.0
        %1111 = vmatprep.subr.mxu0 0.0
        %1112 = vmatpush2.msra.mxu0 0.0
        %1113 = vmatprep.subr.mxu0 0.0
        %1114 = vmatpush2.msra.mxu0 0.0
        %1115 = vmatprep.subr.mxu0 0.0
        %1116 = vmatpush2.msra.mxu0 0.0
        %1117 = vmatprep.subr.mxu0 0.0
        %1118 = vmatpush2.msra.mxu0 0.0
        %1119 = vmatprep.subr.mxu0 0.0
        %1120 = vmatpush2.msra.mxu0 0.0
        %1121 = vmatprep.subr.mxu0 0.0
        %1122 = vmatpush2.msra.mxu0 0.0
        %1123 = vmatprep.mubr.f32.mxu0 0.0
        %1124 = vmatmul.mubr.f32.gmra.mxu0 %v1057
        %v1125 = vpop.f32.mrf.mxu0
        %v1126 = vadd.f32 %v1052, %v1125
        %v1127 = vpop.f32.mrf.mxu0
        %v1128 = vadd.f32 %v1054, %v1127
        %1129 = vdwg.mxu0
        %s1130 = scalar_lea.vmem %s347, 16
        %v1131 = vld [vmem:[%s1130] sm:$0xff]
        %s1132 = scalar_lea.vmem [#allocation3], 32
        %v1133 = vld [vmem:[%s1132] sm:$0xff]
        %v1134 = vld [vmem:[%s1132 + $0x8] sm:$0xff]
        %v1136 = vsel %vm981, %v1131, 0
        %1138 = vmatprep.subr.mxu0 0.0
        %1139 = vmatpush1.msra.mxu0 0.0
        %1140 = vmatprep.subr.mxu0 0.0
        %1141 = vmatpush1.msra.mxu0 0.0
        %1142 = vmatprep.subr.mxu0 0.0
        %1143 = vmatpush1.msra.mxu0 0.0
        %1144 = vmatprep.subr.mxu0 0.0
        %1145 = vmatpush1.msra.mxu0 0.0
        %1146 = vmatprep.subr.mxu0 0.0
        %1147 = vmatpush1.msra.mxu0 0.0
        %1148 = vmatprep.subr.mxu0 0.0
        %1149 = vmatpush1.msra.mxu0 0.0
        %1150 = vmatprep.subr.mxu0 0.0
        %1151 = vmatpush1.msra.mxu0 0.0
        %1152 = vmatprep.subr.mxu0 0.0
        %1153 = vmatpush1.msra.mxu0 0.0
        %1154 = vmatprep.subr.mxu0 0.0
        %1155 = vmatpush1.msra.mxu0 0.0
        %1156 = vmatprep.subr.mxu0 0.0
        %1157 = vmatpush1.msra.mxu0 0.0
        %1158 = vmatprep.subr.mxu0 0.0
        %1159 = vmatpush1.msra.mxu0 0.0
        %1160 = vmatprep.subr.mxu0 0.0
        %1161 = vmatpush1.msra.mxu0 0.0
        %1162 = vmatprep.subr.mxu0 0.0
        %1163 = vmatpush1.msra.mxu0 0.0
        %1164 = vmatprep.subr.mxu0 0.0
        %1165 = vmatpush1.msra.mxu0 0.0
        %1166 = vmatprep.subr.mxu0 0.0
        %1167 = vmatpush1.msra.mxu0 0.0
        %1168 = vmatprep.subr.mxu0 %v1134
        %1169 = vmatpush1.msra.mxu0 %v1133
        %1170 = vmatprep.subr.mxu0 0.0
        %1171 = vmatpush2.msra.mxu0 0.0
        %1172 = vmatprep.subr.mxu0 0.0
        %1173 = vmatpush2.msra.mxu0 0.0
        %1174 = vmatprep.subr.mxu0 0.0
        %1175 = vmatpush2.msra.mxu0 0.0
        %1176 = vmatprep.subr.mxu0 0.0
        %1177 = vmatpush2.msra.mxu0 0.0
        %1178 = vmatprep.subr.mxu0 0.0
        %1179 = vmatpush2.msra.mxu0 0.0
        %1180 = vmatprep.subr.mxu0 0.0
        %1181 = vmatpush2.msra.mxu0 0.0
        %1182 = vmatprep.subr.mxu0 0.0
        %1183 = vmatpush2.msra.mxu0 0.0
        %1184 = vmatprep.subr.mxu0 0.0
        %1185 = vmatpush2.msra.mxu0 0.0
        %1186 = vmatprep.subr.mxu0 0.0
        %1187 = vmatpush2.msra.mxu0 0.0
        %1188 = vmatprep.subr.mxu0 0.0
        %1189 = vmatpush2.msra.mxu0 0.0
        %1190 = vmatprep.subr.mxu0 0.0
        %1191 = vmatpush2.msra.mxu0 0.0
        %1192 = vmatprep.subr.mxu0 0.0
        %1193 = vmatpush2.msra.mxu0 0.0
        %1194 = vmatprep.subr.mxu0 0.0
        %1195 = vmatpush2.msra.mxu0 0.0
        %1196 = vmatprep.subr.mxu0 0.0
        %1197 = vmatpush2.msra.mxu0 0.0
        %1198 = vmatprep.subr.mxu0 0.0
        %1199 = vmatpush2.msra.mxu0 0.0
        %1200 = vmatprep.subr.mxu0 0.0
        %1201 = vmatpush2.msra.mxu0 0.0
        %1202 = vmatprep.mubr.f32.mxu0 0.0
        %1203 = vmatmul.mubr.f32.gmra.mxu0 %v1136
        %v1204 = vpop.f32.mrf.mxu0
        %v1205 = vadd.f32 0.0, %v1204
        %v1206 = vpop.f32.mrf.mxu0
        %v1207 = vadd.f32 0.0, %v1206
        %1208 = vdwg.mxu0
        %v1209 = vadd.f32 %v1126, %v1205
        %v1210 = vadd.f32 %v1128, %v1207
        %s1211 = scalar_lea.vmem %s347, 24
        %v1212 = vld [vmem:[%s1211] sm:$0xff]
        %s1213 = scalar_lea.vmem [#allocation3], 48
        %v1214 = vld [vmem:[%s1213] sm:$0xff]
        %v1215 = vld [vmem:[%s1213 + $0x8] sm:$0xff]
        %v1217 = vsel %vm981, %v1212, 0
        %1219 = vmatprep.subr.mxu0 0.0
        %1220 = vmatpush1.msra.mxu0 0.0
        %1221 = vmatprep.subr.mxu0 0.0
        %1222 = vmatpush1.msra.mxu0 0.0
        %1223 = vmatprep.subr.mxu0 0.0
        %1224 = vmatpush1.msra.mxu0 0.0
        %1225 = vmatprep.subr.mxu0 0.0
        %1226 = vmatpush1.msra.mxu0 0.0
        %1227 = vmatprep.subr.mxu0 0.0
        %1228 = vmatpush1.msra.mxu0 0.0
        %1229 = vmatprep.subr.mxu0 0.0
        %1230 = vmatpush1.msra.mxu0 0.0
        %1231 = vmatprep.subr.mxu0 0.0
        %1232 = vmatpush1.msra.mxu0 0.0
        %1233 = vmatprep.subr.mxu0 0.0
        %1234 = vmatpush1.msra.mxu0 0.0
        %1235 = vmatprep.subr.mxu0 0.0
        %1236 = vmatpush1.msra.mxu0 0.0
        %1237 = vmatprep.subr.mxu0 0.0
        %1238 = vmatpush1.msra.mxu0 0.0
        %1239 = vmatprep.subr.mxu0 0.0
        %1240 = vmatpush1.msra.mxu0 0.0
        %1241 = vmatprep.subr.mxu0 0.0
        %1242 = vmatpush1.msra.mxu0 0.0
        %1243 = vmatprep.subr.mxu0 0.0
        %1244 = vmatpush1.msra.mxu0 0.0
        %1245 = vmatprep.subr.mxu0 0.0
        %1246 = vmatpush1.msra.mxu0 0.0
        %1247 = vmatprep.subr.mxu0 0.0
        %1248 = vmatpush1.msra.mxu0 0.0
        %1249 = vmatprep.subr.mxu0 %v1215
        %1250 = vmatpush1.msra.mxu0 %v1214
        %1251 = vmatprep.subr.mxu0 0.0
        %1252 = vmatpush2.msra.mxu0 0.0
        %1253 = vmatprep.subr.mxu0 0.0
        %1254 = vmatpush2.msra.mxu0 0.0
        %1255 = vmatprep.subr.mxu0 0.0
        %1256 = vmatpush2.msra.mxu0 0.0
        %1257 = vmatprep.subr.mxu0 0.0
        %1258 = vmatpush2.msra.mxu0 0.0
        %1259 = vmatprep.subr.mxu0 0.0
        %1260 = vmatpush2.msra.mxu0 0.0
        %1261 = vmatprep.subr.mxu0 0.0
        %1262 = vmatpush2.msra.mxu0 0.0
        %1263 = vmatprep.subr.mxu0 0.0
        %1264 = vmatpush2.msra.mxu0 0.0
        %1265 = vmatprep.subr.mxu0 0.0
        %1266 = vmatpush2.msra.mxu0 0.0
        %1267 = vmatprep.subr.mxu0 0.0
        %1268 = vmatpush2.msra.mxu0 0.0
        %1269 = vmatprep.subr.mxu0 0.0
        %1270 = vmatpush2.msra.mxu0 0.0
        %1271 = vmatprep.subr.mxu0 0.0
        %1272 = vmatpush2.msra.mxu0 0.0
        %1273 = vmatprep.subr.mxu0 0.0
        %1274 = vmatpush2.msra.mxu0 0.0
        %1275 = vmatprep.subr.mxu0 0.0
        %1276 = vmatpush2.msra.mxu0 0.0
        %1277 = vmatprep.subr.mxu0 0.0
        %1278 = vmatpush2.msra.mxu0 0.0
        %1279 = vmatprep.subr.mxu0 0.0
        %1280 = vmatpush2.msra.mxu0 0.0
        %1281 = vmatprep.subr.mxu0 0.0
        %1282 = vmatpush2.msra.mxu0 0.0
        %1283 = vmatprep.mubr.f32.mxu0 0.0
        %1284 = vmatmul.mubr.f32.gmra.mxu0 %v1217
        %v1285 = vpop.f32.mrf.mxu0
        %v1286 = vadd.f32 0.0, %v1285
        %v1287 = vpop.f32.mrf.mxu0
        %v1288 = vadd.f32 0.0, %v1287
        %1289 = vdwg.mxu0
        %v1290 = vadd.f32 %v1209, %v1286
        %v1291 = vadd.f32 %v1210, %v1288
        %s1292 = scalar_lea.vmem %s347, 32
        %v1293 = vld [vmem:[%s1292] sm:$0xff]
        %s1294 = scalar_lea.vmem [#allocation3], 64
        %v1295 = vld [vmem:[%s1294] sm:$0xff]
        %v1296 = vld [vmem:[%s1294 + $0x8] sm:$0xff]
        %v1298 = vsel %vm981, %v1293, 0
        %1300 = vmatprep.subr.mxu0 0.0
        %1301 = vmatpush1.msra.mxu0 0.0
        %1302 = vmatprep.subr.mxu0 0.0
        %1303 = vmatpush1.msra.mxu0 0.0
        %1304 = vmatprep.subr.mxu0 0.0
        %1305 = vmatpush1.msra.mxu0 0.0
        %1306 = vmatprep.subr.mxu0 0.0
        %1307 = vmatpush1.msra.mxu0 0.0
        %1308 = vmatprep.subr.mxu0 0.0
        %1309 = vmatpush1.msra.mxu0 0.0
        %1310 = vmatprep.subr.mxu0 0.0
        %1311 = vmatpush1.msra.mxu0 0.0
        %1312 = vmatprep.subr.mxu0 0.0
        %1313 = vmatpush1.msra.mxu0 0.0
        %1314 = vmatprep.subr.mxu0 0.0
        %1315 = vmatpush1.msra.mxu0 0.0
        %1316 = vmatprep.subr.mxu0 0.0
        %1317 = vmatpush1.msra.mxu0 0.0
        %1318 = vmatprep.subr.mxu0 0.0
        %1319 = vmatpush1.msra.mxu0 0.0
        %1320 = vmatprep.subr.mxu0 0.0
        %1321 = vmatpush1.msra.mxu0 0.0
        %1322 = vmatprep.subr.mxu0 0.0
        %1323 = vmatpush1.msra.mxu0 0.0
        %1324 = vmatprep.subr.mxu0 0.0
        %1325 = vmatpush1.msra.mxu0 0.0
        %1326 = vmatprep.subr.mxu0 0.0
        %1327 = vmatpush1.msra.mxu0 0.0
        %1328 = vmatprep.subr.mxu0 0.0
        %1329 = vmatpush1.msra.mxu0 0.0
        %1330 = vmatprep.subr.mxu0 %v1296
        %1331 = vmatpush1.msra.mxu0 %v1295
        %1332 = vmatprep.subr.mxu0 0.0
        %1333 = vmatpush2.msra.mxu0 0.0
        %1334 = vmatprep.subr.mxu0 0.0
        %1335 = vmatpush2.msra.mxu0 0.0
        %1336 = vmatprep.subr.mxu0 0.0
        %1337 = vmatpush2.msra.mxu0 0.0
        %1338 = vmatprep.subr.mxu0 0.0
        %1339 = vmatpush2.msra.mxu0 0.0
        %1340 = vmatprep.subr.mxu0 0.0
        %1341 = vmatpush2.msra.mxu0 0.0
        %1342 = vmatprep.subr.mxu0 0.0
        %1343 = vmatpush2.msra.mxu0 0.0
        %1344 = vmatprep.subr.mxu0 0.0
        %1345 = vmatpush2.msra.mxu0 0.0
        %1346 = vmatprep.subr.mxu0 0.0
        %1347 = vmatpush2.msra.mxu0 0.0
        %1348 = vmatprep.subr.mxu0 0.0
        %1349 = vmatpush2.msra.mxu0 0.0
        %1350 = vmatprep.subr.mxu0 0.0
        %1351 = vmatpush2.msra.mxu0 0.0
        %1352 = vmatprep.subr.mxu0 0.0
        %1353 = vmatpush2.msra.mxu0 0.0
        %1354 = vmatprep.subr.mxu0 0.0
        %1355 = vmatpush2.msra.mxu0 0.0
        %1356 = vmatprep.subr.mxu0 0.0
        %1357 = vmatpush2.msra.mxu0 0.0
        %1358 = vmatprep.subr.mxu0 0.0
        %1359 = vmatpush2.msra.mxu0 0.0
        %1360 = vmatprep.subr.mxu0 0.0
        %1361 = vmatpush2.msra.mxu0 0.0
        %1362 = vmatprep.subr.mxu0 0.0
        %1363 = vmatpush2.msra.mxu0 0.0
        %1364 = vmatprep.mubr.f32.mxu0 0.0
        %1365 = vmatmul.mubr.f32.gmra.mxu0 %v1298
        %v1366 = vpop.f32.mrf.mxu0
        %v1367 = vadd.f32 0.0, %v1366
        %v1368 = vpop.f32.mrf.mxu0
        %v1369 = vadd.f32 0.0, %v1368
        %1370 = vdwg.mxu0
        %v1371 = vadd.f32 %v1290, %v1367
        %v1372 = vadd.f32 %v1291, %v1369
        %s1373 = scalar_lea.vmem %s347, 40
        %v1374 = vld [vmem:[%s1373] sm:$0xff]
        %s1375 = scalar_lea.vmem [#allocation3], 80
        %v1376 = vld [vmem:[%s1375] sm:$0xff]
        %v1377 = vld [vmem:[%s1375 + $0x8] sm:$0xff]
        %v1379 = vsel %vm981, %v1374, 0
        %1381 = vmatprep.subr.mxu0 0.0
        %1382 = vmatpush1.msra.mxu0 0.0
        %1383 = vmatprep.subr.mxu0 0.0
        %1384 = vmatpush1.msra.mxu0 0.0
        %1385 = vmatprep.subr.mxu0 0.0
        %1386 = vmatpush1.msra.mxu0 0.0
        %1387 = vmatprep.subr.mxu0 0.0
        %1388 = vmatpush1.msra.mxu0 0.0
        %1389 = vmatprep.subr.mxu0 0.0
        %1390 = vmatpush1.msra.mxu0 0.0
        %1391 = vmatprep.subr.mxu0 0.0
        %1392 = vmatpush1.msra.mxu0 0.0
        %1393 = vmatprep.subr.mxu0 0.0
        %1394 = vmatpush1.msra.mxu0 0.0
        %1395 = vmatprep.subr.mxu0 0.0
        %1396 = vmatpush1.msra.mxu0 0.0
        %1397 = vmatprep.subr.mxu0 0.0
        %1398 = vmatpush1.msra.mxu0 0.0
        %1399 = vmatprep.subr.mxu0 0.0
        %1400 = vmatpush1.msra.mxu0 0.0
        %1401 = vmatprep.subr.mxu0 0.0
        %1402 = vmatpush1.msra.mxu0 0.0
        %1403 = vmatprep.subr.mxu0 0.0
        %1404 = vmatpush1.msra.mxu0 0.0
        %1405 = vmatprep.subr.mxu0 0.0
        %1406 = vmatpush1.msra.mxu0 0.0
        %1407 = vmatprep.subr.mxu0 0.0
        %1408 = vmatpush1.msra.mxu0 0.0
        %1409 = vmatprep.subr.mxu0 0.0
        %1410 = vmatpush1.msra.mxu0 0.0
        %1411 = vmatprep.subr.mxu0 %v1377
        %1412 = vmatpush1.msra.mxu0 %v1376
        %1413 = vmatprep.subr.mxu0 0.0
        %1414 = vmatpush2.msra.mxu0 0.0
        %1415 = vmatprep.subr.mxu0 0.0
        %1416 = vmatpush2.msra.mxu0 0.0
        %1417 = vmatprep.subr.mxu0 0.0
        %1418 = vmatpush2.msra.mxu0 0.0
        %1419 = vmatprep.subr.mxu0 0.0
        %1420 = vmatpush2.msra.mxu0 0.0
        %1421 = vmatprep.subr.mxu0 0.0
        %1422 = vmatpush2.msra.mxu0 0.0
        %1423 = vmatprep.subr.mxu0 0.0
        %1424 = vmatpush2.msra.mxu0 0.0
        %1425 = vmatprep.subr.mxu0 0.0
        %1426 = vmatpush2.msra.mxu0 0.0
        %1427 = vmatprep.subr.mxu0 0.0
        %1428 = vmatpush2.msra.mxu0 0.0
        %1429 = vmatprep.subr.mxu0 0.0
        %1430 = vmatpush2.msra.mxu0 0.0
        %1431 = vmatprep.subr.mxu0 0.0
        %1432 = vmatpush2.msra.mxu0 0.0
        %1433 = vmatprep.subr.mxu0 0.0
        %1434 = vmatpush2.msra.mxu0 0.0
        %1435 = vmatprep.subr.mxu0 0.0
        %1436 = vmatpush2.msra.mxu0 0.0
        %1437 = vmatprep.subr.mxu0 0.0
        %1438 = vmatpush2.msra.mxu0 0.0
        %1439 = vmatprep.subr.mxu0 0.0
        %1440 = vmatpush2.msra.mxu0 0.0
        %1441 = vmatprep.subr.mxu0 0.0
        %1442 = vmatpush2.msra.mxu0 0.0
        %1443 = vmatprep.subr.mxu0 0.0
        %1444 = vmatpush2.msra.mxu0 0.0
        %1445 = vmatprep.mubr.f32.mxu0 0.0
        %1446 = vmatmul.mubr.f32.gmra.mxu0 %v1379
        %v1447 = vpop.f32.mrf.mxu0
        %v1448 = vadd.f32 0.0, %v1447
        %v1449 = vpop.f32.mrf.mxu0
        %v1450 = vadd.f32 0.0, %v1449
        %1451 = vdwg.mxu0
        %v1452 = vadd.f32 %v1371, %v1448
        %v1453 = vadd.f32 %v1372, %v1450
        %s1454 = scalar_lea.vmem %s347, 48
        %v1455 = vld [vmem:[%s1454] sm:$0xff]
        %s1456 = scalar_lea.vmem [#allocation3], 96
        %v1457 = vld [vmem:[%s1456] sm:$0xff]
        %v1458 = vld [vmem:[%s1456 + $0x8] sm:$0xff]
        %v1460 = vsel %vm981, %v1455, 0
        %1462 = vmatprep.subr.mxu0 0.0
        %1463 = vmatpush1.msra.mxu0 0.0
        %1464 = vmatprep.subr.mxu0 0.0
        %1465 = vmatpush1.msra.mxu0 0.0
        %1466 = vmatprep.subr.mxu0 0.0
        %1467 = vmatpush1.msra.mxu0 0.0
        %1468 = vmatprep.subr.mxu0 0.0
        %1469 = vmatpush1.msra.mxu0 0.0
        %1470 = vmatprep.subr.mxu0 0.0
        %1471 = vmatpush1.msra.mxu0 0.0
        %1472 = vmatprep.subr.mxu0 0.0
        %1473 = vmatpush1.msra.mxu0 0.0
        %1474 = vmatprep.subr.mxu0 0.0
        %1475 = vmatpush1.msra.mxu0 0.0
        %1476 = vmatprep.subr.mxu0 0.0
        %1477 = vmatpush1.msra.mxu0 0.0
        %1478 = vmatprep.subr.mxu0 0.0
        %1479 = vmatpush1.msra.mxu0 0.0
        %1480 = vmatprep.subr.mxu0 0.0
        %1481 = vmatpush1.msra.mxu0 0.0
        %1482 = vmatprep.subr.mxu0 0.0
        %1483 = vmatpush1.msra.mxu0 0.0
        %1484 = vmatprep.subr.mxu0 0.0
        %1485 = vmatpush1.msra.mxu0 0.0
        %1486 = vmatprep.subr.mxu0 0.0
        %1487 = vmatpush1.msra.mxu0 0.0
        %1488 = vmatprep.subr.mxu0 0.0
        %1489 = vmatpush1.msra.mxu0 0.0
        %1490 = vmatprep.subr.mxu0 0.0
        %1491 = vmatpush1.msra.mxu0 0.0
        %1492 = vmatprep.subr.mxu0 %v1458
        %1493 = vmatpush1.msra.mxu0 %v1457
        %1494 = vmatprep.subr.mxu0 0.0
        %1495 = vmatpush2.msra.mxu0 0.0
        %1496 = vmatprep.subr.mxu0 0.0
        %1497 = vmatpush2.msra.mxu0 0.0
        %1498 = vmatprep.subr.mxu0 0.0
        %1499 = vmatpush2.msra.mxu0 0.0
        %1500 = vmatprep.subr.mxu0 0.0
        %1501 = vmatpush2.msra.mxu0 0.0
        %1502 = vmatprep.subr.mxu0 0.0
        %1503 = vmatpush2.msra.mxu0 0.0
        %1504 = vmatprep.subr.mxu0 0.0
        %1505 = vmatpush2.msra.mxu0 0.0
        %1506 = vmatprep.subr.mxu0 0.0
        %1507 = vmatpush2.msra.mxu0 0.0
        %1508 = vmatprep.subr.mxu0 0.0
        %1509 = vmatpush2.msra.mxu0 0.0
        %1510 = vmatprep.subr.mxu0 0.0
        %1511 = vmatpush2.msra.mxu0 0.0
        %1512 = vmatprep.subr.mxu0 0.0
        %1513 = vmatpush2.msra.mxu0 0.0
        %1514 = vmatprep.subr.mxu0 0.0
        %1515 = vmatpush2.msra.mxu0 0.0
        %1516 = vmatprep.subr.mxu0 0.0
        %1517 = vmatpush2.msra.mxu0 0.0
        %1518 = vmatprep.subr.mxu0 0.0
        %1519 = vmatpush2.msra.mxu0 0.0
        %1520 = vmatprep.subr.mxu0 0.0
        %1521 = vmatpush2.msra.mxu0 0.0
        %1522 = vmatprep.subr.mxu0 0.0
        %1523 = vmatpush2.msra.mxu0 0.0
        %1524 = vmatprep.subr.mxu0 0.0
        %1525 = vmatpush2.msra.mxu0 0.0
        %1526 = vmatprep.mubr.f32.mxu0 0.0
        %1527 = vmatmul.mubr.f32.gmra.mxu0 %v1460
        %v1528 = vpop.f32.mrf.mxu0
        %v1529 = vadd.f32 0.0, %v1528
        %v1530 = vpop.f32.mrf.mxu0
        %v1531 = vadd.f32 0.0, %v1530
        %1532 = vdwg.mxu0
        %v1533 = vadd.f32 %v1452, %v1529
        %v1534 = vadd.f32 %v1453, %v1531
        %s1535 = scalar_lea.vmem %s347, 56
        %v1536 = vld [vmem:[%s1535] sm:$0xff]
        %s1537 = scalar_lea.vmem [#allocation3], 112
        %v1538 = vld [vmem:[%s1537] sm:$0xff]
        %v1539 = vld [vmem:[%s1537 + $0x8] sm:$0xff]
        %v1541 = vsel %vm981, %v1536, 0
        %1543 = vmatprep.subr.mxu0 0.0
        %1544 = vmatpush1.msra.mxu0 0.0
        %1545 = vmatprep.subr.mxu0 0.0
        %1546 = vmatpush1.msra.mxu0 0.0
        %1547 = vmatprep.subr.mxu0 0.0
        %1548 = vmatpush1.msra.mxu0 0.0
        %1549 = vmatprep.subr.mxu0 0.0
        %1550 = vmatpush1.msra.mxu0 0.0
        %1551 = vmatprep.subr.mxu0 0.0
        %1552 = vmatpush1.msra.mxu0 0.0
        %1553 = vmatprep.subr.mxu0 0.0
        %1554 = vmatpush1.msra.mxu0 0.0
        %1555 = vmatprep.subr.mxu0 0.0
        %1556 = vmatpush1.msra.mxu0 0.0
        %1557 = vmatprep.subr.mxu0 0.0
        %1558 = vmatpush1.msra.mxu0 0.0
        %1559 = vmatprep.subr.mxu0 0.0
        %1560 = vmatpush1.msra.mxu0 0.0
        %1561 = vmatprep.subr.mxu0 0.0
        %1562 = vmatpush1.msra.mxu0 0.0
        %1563 = vmatprep.subr.mxu0 0.0
        %1564 = vmatpush1.msra.mxu0 0.0
        %1565 = vmatprep.subr.mxu0 0.0
        %1566 = vmatpush1.msra.mxu0 0.0
        %1567 = vmatprep.subr.mxu0 0.0
        %1568 = vmatpush1.msra.mxu0 0.0
        %1569 = vmatprep.subr.mxu0 0.0
        %1570 = vmatpush1.msra.mxu0 0.0
        %1571 = vmatprep.subr.mxu0 0.0
        %1572 = vmatpush1.msra.mxu0 0.0
        %1573 = vmatprep.subr.mxu0 %v1539
        %1574 = vmatpush1.msra.mxu0 %v1538
        %1575 = vmatprep.subr.mxu0 0.0
        %1576 = vmatpush2.msra.mxu0 0.0
        %1577 = vmatprep.subr.mxu0 0.0
        %1578 = vmatpush2.msra.mxu0 0.0
        %1579 = vmatprep.subr.mxu0 0.0
        %1580 = vmatpush2.msra.mxu0 0.0
        %1581 = vmatprep.subr.mxu0 0.0
        %1582 = vmatpush2.msra.mxu0 0.0
        %1583 = vmatprep.subr.mxu0 0.0
        %1584 = vmatpush2.msra.mxu0 0.0
        %1585 = vmatprep.subr.mxu0 0.0
        %1586 = vmatpush2.msra.mxu0 0.0
        %1587 = vmatprep.subr.mxu0 0.0
        %1588 = vmatpush2.msra.mxu0 0.0
        %1589 = vmatprep.subr.mxu0 0.0
        %1590 = vmatpush2.msra.mxu0 0.0
        %1591 = vmatprep.subr.mxu0 0.0
        %1592 = vmatpush2.msra.mxu0 0.0
        %1593 = vmatprep.subr.mxu0 0.0
        %1594 = vmatpush2.msra.mxu0 0.0
        %1595 = vmatprep.subr.mxu0 0.0
        %1596 = vmatpush2.msra.mxu0 0.0
        %1597 = vmatprep.subr.mxu0 0.0
        %1598 = vmatpush2.msra.mxu0 0.0
        %1599 = vmatprep.subr.mxu0 0.0
        %1600 = vmatpush2.msra.mxu0 0.0
        %1601 = vmatprep.subr.mxu0 0.0
        %1602 = vmatpush2.msra.mxu0 0.0
        %1603 = vmatprep.subr.mxu0 0.0
        %1604 = vmatpush2.msra.mxu0 0.0
        %1605 = vmatprep.subr.mxu0 0.0
        %1606 = vmatpush2.msra.mxu0 0.0
        %1607 = vmatprep.mubr.f32.mxu0 0.0
        %1608 = vmatmul.mubr.f32.gmra.mxu0 %v1541
        %v1609 = vpop.f32.mrf.mxu0
        %v1610 = vadd.f32 0.0, %v1609
        %v1611 = vpop.f32.mrf.mxu0
        %v1612 = vadd.f32 0.0, %v1611
        %1613 = vdwg.mxu0
        %v1614 = vadd.f32 %v1533, %v1610
        %v1615 = vadd.f32 %v1534, %v1612
        %s1616 = scalar_lea.vmem %s347, 64
        %v1617 = vld [vmem:[%s1616] sm:$0xff]
        %s1618 = scalar_lea.vmem [#allocation3], 128
        %v1619 = vld [vmem:[%s1618] sm:$0xff]
        %v1620 = vld [vmem:[%s1618 + $0x8] sm:$0xff]
        %v1622 = vsel %vm981, %v1617, 0
        %1624 = vmatprep.subr.mxu0 0.0
        %1625 = vmatpush1.msra.mxu0 0.0
        %1626 = vmatprep.subr.mxu0 0.0
        %1627 = vmatpush1.msra.mxu0 0.0
        %1628 = vmatprep.subr.mxu0 0.0
        %1629 = vmatpush1.msra.mxu0 0.0
        %1630 = vmatprep.subr.mxu0 0.0
        %1631 = vmatpush1.msra.mxu0 0.0
        %1632 = vmatprep.subr.mxu0 0.0
        %1633 = vmatpush1.msra.mxu0 0.0
        %1634 = vmatprep.subr.mxu0 0.0
        %1635 = vmatpush1.msra.mxu0 0.0
        %1636 = vmatprep.subr.mxu0 0.0
        %1637 = vmatpush1.msra.mxu0 0.0
        %1638 = vmatprep.subr.mxu0 0.0
        %1639 = vmatpush1.msra.mxu0 0.0
        %1640 = vmatprep.subr.mxu0 0.0
        %1641 = vmatpush1.msra.mxu0 0.0
        %1642 = vmatprep.subr.mxu0 0.0
        %1643 = vmatpush1.msra.mxu0 0.0
        %1644 = vmatprep.subr.mxu0 0.0
        %1645 = vmatpush1.msra.mxu0 0.0
        %1646 = vmatprep.subr.mxu0 0.0
        %1647 = vmatpush1.msra.mxu0 0.0
        %1648 = vmatprep.subr.mxu0 0.0
        %1649 = vmatpush1.msra.mxu0 0.0
        %1650 = vmatprep.subr.mxu0 0.0
        %1651 = vmatpush1.msra.mxu0 0.0
        %1652 = vmatprep.subr.mxu0 0.0
        %1653 = vmatpush1.msra.mxu0 0.0
        %1654 = vmatprep.subr.mxu0 %v1620
        %1655 = vmatpush1.msra.mxu0 %v1619
        %1656 = vmatprep.subr.mxu0 0.0
        %1657 = vmatpush2.msra.mxu0 0.0
        %1658 = vmatprep.subr.mxu0 0.0
        %1659 = vmatpush2.msra.mxu0 0.0
        %1660 = vmatprep.subr.mxu0 0.0
        %1661 = vmatpush2.msra.mxu0 0.0
        %1662 = vmatprep.subr.mxu0 0.0
        %1663 = vmatpush2.msra.mxu0 0.0
        %1664 = vmatprep.subr.mxu0 0.0
        %1665 = vmatpush2.msra.mxu0 0.0
        %1666 = vmatprep.subr.mxu0 0.0
        %1667 = vmatpush2.msra.mxu0 0.0
        %1668 = vmatprep.subr.mxu0 0.0
        %1669 = vmatpush2.msra.mxu0 0.0
        %1670 = vmatprep.subr.mxu0 0.0
        %1671 = vmatpush2.msra.mxu0 0.0
        %1672 = vmatprep.subr.mxu0 0.0
        %1673 = vmatpush2.msra.mxu0 0.0
        %1674 = vmatprep.subr.mxu0 0.0
        %1675 = vmatpush2.msra.mxu0 0.0
        %1676 = vmatprep.subr.mxu0 0.0
        %1677 = vmatpush2.msra.mxu0 0.0
        %1678 = vmatprep.subr.mxu0 0.0
        %1679 = vmatpush2.msra.mxu0 0.0
        %1680 = vmatprep.subr.mxu0 0.0
        %1681 = vmatpush2.msra.mxu0 0.0
        %1682 = vmatprep.subr.mxu0 0.0
        %1683 = vmatpush2.msra.mxu0 0.0
        %1684 = vmatprep.subr.mxu0 0.0
        %1685 = vmatpush2.msra.mxu0 0.0
        %1686 = vmatprep.subr.mxu0 0.0
        %1687 = vmatpush2.msra.mxu0 0.0
        %1688 = vmatprep.mubr.f32.mxu0 0.0
        %1689 = vmatmul.mubr.f32.gmra.mxu0 %v1622
        %v1690 = vpop.f32.mrf.mxu0
        %v1691 = vadd.f32 0.0, %v1690
        %v1692 = vpop.f32.mrf.mxu0
        %v1693 = vadd.f32 0.0, %v1692
        %1694 = vdwg.mxu0
        %v1695 = vadd.f32 %v1614, %v1691
        %v1696 = vadd.f32 %v1615, %v1693
        %v1697 = vld [vmem:[%s351] sm:$0xff]
        %1699 = vset.pattern.permute.xlu0 0
        %1700 = vperm.xlu0 %1699, %v1697
        %v1701 = vpop.permute.xlu0 %1700
        %v1703 = vadd.f32 %v1695, %v1701
        %v1704 = vadd.f32 %v1696, %v1701
        %1705 = vst [vmem:[%s338] sm:$0xff] %v1703
        %1706 = vst [vmem:[%s338 + $0x8] sm:$0xff] %v1704
        %s1707 = sand.u32 %s227, 1
        %s1708 = scalar_lea.sflag [#allocation5], %s1707
        %s1709 = sand.u32 %s227, 1
        %s1710 = smul.addr %s1709, 16
        %s1711 = scalar_lea.vmem [#allocation4], %s1710
        // Predicated region
        $region57: #{tpu_custom_call.1} parent=51 // pred_check
          %p1712 = pneg %p237
        $region58: #{tpu_custom_call.1} parent=51 // pred_check_branch
          %1714 = sbr.rel (%p1712) target = $region60
        $region59: #{tpu_custom_call.1} parent=51 // pred_region
          %s1716 = ssub.s32 256, 256
          %1717 = vsyncadd %s1708, %s1716
          %s1718 = smul.addr %s27, 2
          %s1719 = smul.addr %s26, 2
          %s1720 = sadd.s32 %s1718, %s1719
          %s1721 = smul.addr %s1720, 128
          %s1722 = scalar_lea.hbm %s8, %s1721
          %s1724 = sshll.u32 %s1711, 4
          %s1725 = int_to_ptr.vmem [resolvable:$true] %s1724
          %1727 = dma.vmem_to_hbm [thread:$0]  %s1725, 256, %s1722, %s1708
        $region60: #{tpu_custom_call.1} parent=51 // pred_fallthru
          _
      $region52: #{tpu_custom_call.1} parent=5 // pred_fallthru
        _
      %p1728 = scmp.le.s32.totalorder 2, %s17
      // Predicated region
      $region61: #{tpu_custom_call.1} parent=5 // pred_check
        %p1729 = pneg %p1728
      $region62: #{tpu_custom_call.1} parent=5 // pred_check_branch
        %1731 = sbr.rel (%p1729) target = $region64
      $region63: #{tpu_custom_call.1} parent=5 // pred_region
        %s1732 = ssub.s32 %s17, 2
        // Predicated region
        $region65: #{tpu_custom_call.1} parent=63 // pred_check
          %p1733 = pneg %p243
        $region66: #{tpu_custom_call.1} parent=63 // pred_check_branch
          %1735 = sbr.rel (%p1733) target = $region68
        $region67: #{tpu_custom_call.1} parent=63 // pred_region
          %s1736 = sand.u32 %s228, 1
          %s1737 = scalar_lea.sflag [#allocation5], %s1736
          %s1738 = sand.u32 %s228, 1
          %s1739 = smul.addr %s1738, 16
          %s1740 = scalar_lea.vmem [#allocation4], %s1739
          %1741 = dma.done %s1737, 256
        $region68: #{tpu_custom_call.1} parent=63 // pred_fallthru
          _
      $region64: #{tpu_custom_call.1} parent=5 // pred_fallthru
        _
    $region6: #{tpu_custom_call.1} parent=1 // loop_footer
      %s21 = sadd.s32 1, %s17
    $region7: #{tpu_custom_call.1} parent=1 // loop_footer_branch
      %16 = sbr.rel target = $region3
    $region8: #{tpu_custom_call.1} parent=1 // loop_exit
      _
    %1742 = vsyncpa [#allocation5], 1
    %s1743 = scalar_lea.sflag [#allocation5], 1
    %1744 = vsyncpa %s1743, 1

</llo_original>
